<compile_context>
chip_gen: v5e
topology: v5e:2x2
jax: 0.10.0
libtpu: 0.0.40
codegen_flags: <defaults>
</compile_context>

<pallas_src>
import numpy as np
import jax
import jax.numpy as jnp
from jax.experimental import pallas as pl
from jax.experimental.pallas import tpu as pltpu

# hidden widths fixed by the module definition
_CG, _CT1, _CT2, _CM = 16, 32, 16, 8


def _leaky_relu(x, slope=0.01):
    return jnp.where(x > 0, x, slope * x)


def _round_up(v, m):
    return ((v + m - 1) // m) * m


def _slab_offsets(f_pg_p, f_neo_p):
    o_w1 = 0
    o_w2 = o_w1 + f_pg_p
    o_tw1 = o_w2 + _CG
    o_tw2 = o_tw1 + f_neo_p
    o_w3 = o_tw2 + _CT1
    rows = o_w3 + _CT2
    return o_w1, o_w2, o_tw1, o_tw2, o_w3, rows


def _make_kernel(sps, n_g, np1, f_pg_p, f_neo_p):
    r_t = sps * np1
    o_w1, o_w2, o_tw1, o_tw2, o_w3, _ = _slab_offsets(f_pg_p, f_neo_p)

    def kernel(x_ref, a_ref, tf_ref, sel_ref, segg_ref, segt_ref, scat_ref,
               wslab_ref, bslab_ref, out_ref):
        f32 = jnp.float32
        W = wslab_ref[...]                    # [rows, 128] packed weight slab
        Bs = bslab_ref[...]                   # [16, 128] packed bias slab
        b1 = Bs[0:1, 0:_CG]
        b2 = Bs[1:2, 0:_CG]
        tb1 = Bs[2:3, 0:_CT1]
        tb2 = Bs[3:4, 0:_CT2]
        b3 = Bs[4:5, 0:_CM]
        wg = Bs[5:6, 0:_CG]                   # pre-scaled by wmix[0]*wc[0]
        w4 = Bs[6:7, 0:_CM]                   # pre-scaled by wmix[1]*wc[1]
        bg = Bs[7:8, 0:1]                     # pre-scaled, bc folded in
        b4 = Bs[8:9, 0:1]                     # pre-scaled

        # ---------------- PG GNN branch (SPS graphs, block-diagonal adjacency) ------
        # GraphConv(F,16) -> ReLU -> (Dropout) -> GraphConv(16,16) -> ReLU -> (Dropout)
        # -> global_mean_pool -> Linear(16,1)
        xg = x_ref[...]                       # [SPS*n, F_pg_pad]
        A = a_ref[...]                        # [SPS*n, SPS*n] block-diagonal
        w1 = W[o_w1:o_w1 + f_pg_p, 0:2 * _CG]
        w2 = W[o_w2:o_w2 + _CG, 0:2 * _CG]
        p1 = jnp.dot(xg, w1, preferred_element_type=f32)                 # [R_g, 32]
        h1 = jnp.maximum(
            p1[:, :_CG] + jnp.dot(A, p1[:, _CG:2 * _CG], preferred_element_type=f32) + b1,
            0.0)
        p2 = jnp.dot(h1, w2, preferred_element_type=f32)                 # [R_g, 32]
        h2 = jnp.maximum(
            p2[:, :_CG] + jnp.dot(A, p2[:, _CG:2 * _CG], preferred_element_type=f32) + b2,
            0.0)
        pooled_g = jnp.dot(segg_ref[...], h2, preferred_element_type=f32)  # [SPS, 16]
        pg_head = jnp.sum(pooled_g * wg, axis=-1, keepdims=True) + bg       # [SPS, 1]

        # ---------------- neo4j tree-conv branch (SPS trees, node-major rows) -------
        # BinaryTreeConv(F,32) -> TreeLayerNorm -> LeakyReLU ->
        # BinaryTreeConv(32,16) -> TreeLayerNorm -> DynamicPooling -> Linear(16,8)
        # -> LeakyReLU -> Linear(8,1)
        h0 = tf_ref[...]                      # [SPS*(N+1), F_neo_pad]
        Sl = sel_ref[0]                       # [R_t, R_t] block-diag left-child selector
        Sr = sel_ref[1]                       # [R_t, R_t] block-diag right-child selector
        seg_t = segt_ref[...]                 # [SPS, R_t] per-sample sum
        scat = scat_ref[...]                  # [R_t, SPS] per-sample scatter (seg_t.T)
        row = jax.lax.broadcasted_iota(jnp.int32, (r_t, 1), 0)
        row_mask = (row >= sps).astype(f32)   # rows [0,SPS) = per-sample "missing child"

        def tree_conv(h, wcat, b, c_out):
            p = jnp.dot(h, wcat, preferred_element_type=f32)             # [R_t, 3*C]
            own = p[:, :c_out]
            left = jnp.dot(Sl, p[:, c_out:2 * c_out], preferred_element_type=f32)
            right = jnp.dot(Sr, p[:, 2 * c_out:3 * c_out], preferred_element_type=f32)
            return row_mask * (own + b) + left + right                   # [R_t, C]

        def tree_norm(h):
            c = h.shape[-1]
            cnt = np1 * c
            sum_s = jnp.sum(jnp.dot(seg_t, h, preferred_element_type=f32),
                            axis=-1, keepdims=True)                      # [SPS, 1]
            mean_r = jnp.dot(scat, sum_s * (1.0 / cnt),
                             preferred_element_type=f32)                 # [R_t, 1]
            cent = h - mean_r
            ssq_s = jnp.sum(jnp.dot(seg_t, cent * cent, preferred_element_type=f32),
                            axis=-1, keepdims=True)                      # [SPS, 1]
            inv_s = pl.reciprocal(jnp.sqrt(ssq_s * (1.0 / (cnt - 1))) + 1e-5,
                                  approx=False)
            inv_r = jnp.dot(scat, inv_s, preferred_element_type=f32)     # [R_t, 1]
            return cent * inv_r

        tw1 = W[o_tw1:o_tw1 + f_neo_p, 0:3 * _CT1]
        tw2 = W[o_tw2:o_tw2 + _CT1, 0:3 * _CT2]
        w3 = W[o_w3:o_w3 + _CT2, 0:_CM]

        c1 = tree_conv(h0, tw1, tb1, _CT1)                               # [R_t, 32]
        t1 = _leaky_relu(tree_norm(c1))
        c2 = tree_conv(t1, tw2, tb2, _CT2)                               # [R_t, 16]
        t2 = tree_norm(c2)

        # DynamicPooling: per-sample max over all N+1 slots (contiguous [SPS, C] slices)
        pooled_t = t2[0:sps, :]
        for j in range(1, np1):
            pooled_t = jnp.maximum(pooled_t, t2[j * sps:(j + 1) * sps, :])

        m1 = _leaky_relu(jnp.dot(pooled_t, w3, preferred_element_type=f32) + b3)
        neo_head = jnp.sum(m1 * w4, axis=-1, keepdims=True) + b4         # [SPS, 1]

        # cross-model combine is folded into the heads (wrapper pre-scaled wg/bg/w4/b4)
        res = pg_head + neo_head                                         # [SPS, 1]
        out_ref[...] = jnp.broadcast_to(res, out_ref.shape)              # lane-dense store

    return kernel


def lero_cross_forward(x, adj, tfeat, sel_left, sel_right,
                       w1root, w1rel, b1, w2root, w2rel, b2, wg, bg,
                       tw1s, tw1l, tw1r, tb1, tw2s, tw2l, tw2r, tb2,
                       w3, b3, w4, b4, wmix, wc, bc, *, sps=16):
    """x: [B, n, F_pg]; adj: [B, n, n]; tfeat: [B, N+1, F_neo];
    sel_left/right: [N+1, N+1] static child selectors.  Returns [B, 1]."""
    f32 = jnp.float32
    B, n_g, f_pg = x.shape
    np1 = tfeat.shape[1]
    f_neo = tfeat.shape[2]

    sps = max(8, min(int(sps), _round_up(B, 8)))
    sps = _round_up(sps, 8)
    num_steps = -(-B // sps)
    b_pad = num_steps * sps
    f_pg_p = _round_up(f_pg, 8)
    f_neo_p = _round_up(f_neo, 8)
    r_g = sps * n_g
    r_t = sps * np1

    # ---- pad batch to a multiple of SPS (padded samples are discarded afterwards) ----
    if b_pad != B:
        pad = b_pad - B
        x = jnp.pad(x, ((0, pad), (0, 0), (0, 0)))
        adj = jnp.pad(adj, ((0, pad), (0, 0), (0, 0)))
        tfeat = jnp.pad(tfeat, ((0, pad), (0, 0), (0, 0)))

    # ---- zero-pad feature (K) dims to multiples of 8 ----
    xp = jnp.pad(x.astype(f32), ((0, 0), (0, 0), (0, f_pg_p - f_pg)))
    tfp = jnp.pad(tfeat.astype(f32), ((0, 0), (0, 0), (0, f_neo_p - f_neo)))

    # ---- per-step flattened activations ----
    x_flat = xp.reshape(b_pad * n_g, f_pg_p)                     # sample-major rows
    tf_flat = (tfp.reshape(num_steps, sps, np1, f_neo_p)
                  .transpose(0, 2, 1, 3)                         # node-major within step
                  .reshape(num_steps * r_t, f_neo_p))

    # ---- per-step block-diagonal adjacency [num_steps, SPS*n, SPS*n] ----
    eye_s = jnp.eye(sps, dtype=f32)
    adj_bd = jnp.einsum('gsij,st->gsitj',
                        adj.astype(f32).reshape(num_steps, sps, n_g, n_g),
                        eye_s).reshape(num_steps, r_g, r_g)

    # ---- batch-invariant structure (selectors, segment pool / scatter matrices) ----
    sel_bd = jnp.stack([jnp.kron(sel_left.astype(f32), eye_s),
                        jnp.kron(sel_right.astype(f32), eye_s)])          # [2, R_t, R_t]
    seg_g = jnp.kron(eye_s, jnp.full((1, n_g), 1.0 / n_g, f32))           # [SPS, R_g]
    seg_t = jnp.tile(eye_s, (1, np1))                                     # [SPS, R_t]
    scat_t = seg_t.T                                                      # [R_t, SPS]

    # ---- parameter slabs (cross-model combine folded into the two heads) ----
    scale_pg = wmix[0, 0] * wc[0, 0]
    scale_neo = wmix[0, 1] * wc[0, 1]
    w1cat = jnp.pad(jnp.concatenate([w1root, w1rel], axis=1),
                    ((0, f_pg_p - f_pg), (0, 0)))                         # [F_pg_p, 32]
    w2cat = jnp.concatenate([w2root, w2rel], axis=1)                      # [16, 32]
    tw1cat = jnp.pad(jnp.concatenate([tw1s, tw1l, tw1r], axis=1),
                     ((0, f_neo_p - f_neo), (0, 0)))                      # [F_neo_p, 96]
    tw2cat = jnp.concatenate([tw2s, tw2l, tw2r], axis=1)                  # [32, 48]

    o_w1, o_w2, o_tw1, o_tw2, o_w3, n_rows = _slab_offsets(f_pg_p, f_neo_p)
    wslab = jnp.zeros((n_rows, 128), f32)
    wslab = wslab.at[o_w1:o_w1 + f_pg_p, 0:2 * _CG].set(w1cat.astype(f32))
    wslab = wslab.at[o_w2:o_w2 + _CG, 0:2 * _CG].set(w2cat.astype(f32))
    wslab = wslab.at[o_tw1:o_tw1 + f_neo_p, 0:3 * _CT1].set(tw1cat.astype(f32))
    wslab = wslab.at[o_tw2:o_tw2 + _CT1, 0:3 * _CT2].set(tw2cat.astype(f32))
    wslab = wslab.at[o_w3:o_w3 + _CT2, 0:_CM].set(w3.astype(f32))

    bslab = jnp.zeros((16, 128), f32)
    bslab = bslab.at[0, 0:_CG].set(b1[0].astype(f32))
    bslab = bslab.at[1, 0:_CG].set(b2[0].astype(f32))
    bslab = bslab.at[2, 0:_CT1].set(tb1[0].astype(f32))
    bslab = bslab.at[3, 0:_CT2].set(tb2[0].astype(f32))
    bslab = bslab.at[4, 0:_CM].set(b3[0].astype(f32))
    bslab = bslab.at[5, 0:_CG].set((wg[0] * scale_pg).astype(f32))
    bslab = bslab.at[6, 0:_CM].set((w4[0] * scale_neo).astype(f32))
    bslab = bslab.at[7, 0].set((bg[0, 0] * scale_pg + bc[0, 0]).astype(f32))
    bslab = bslab.at[8, 0].set((b4[0, 0] * scale_neo).astype(f32))

    kernel = _make_kernel(sps, n_g, np1, f_pg_p, f_neo_p)

    def shared(a):
        zeros = (0,) * a.ndim
        return pl.BlockSpec(tuple(a.shape), lambda g, z=zeros: z)

    out = pl.pallas_call(
        kernel,
        grid=(num_steps,),
        in_specs=[
            pl.BlockSpec((r_g, f_pg_p), lambda g: (g, 0)),        # x (per-step block)
            pl.BlockSpec((None, r_g, r_g), lambda g: (g, 0, 0)),  # block-diag adjacency
            pl.BlockSpec((r_t, f_neo_p), lambda g: (g, 0)),       # tree features
            shared(sel_bd), shared(seg_g), shared(seg_t), shared(scat_t),
            shared(wslab), shared(bslab),
        ],
        out_specs=pl.BlockSpec((sps, 128), lambda g: (g, 0)),
        out_shape=jax.ShapeDtypeStruct((b_pad, 128), f32),
        compiler_params=pltpu.CompilerParams(
            dimension_semantics=("parallel",)),
    )(x_flat, adj_bd, tf_flat, sel_bd, seg_g, seg_t, scat_t, wslab, bslab)
    return out[:B, 0:1]                                           # [B, 1]


def reference_forward(x, adj, tfeat, sel_l, sel_r,
                      w1root, w1rel, b1, w2root, w2rel, b2, wg, bg,
                      tw1s, tw1l, tw1r, tb1, tw2s, tw2l, tw2r, tb2,
                      w3, b3, w4, b4, wmix, wc, bc):
    # Pure-JAX mirror of the module forward (same semantics as the Pallas kernel).
    leaky = lambda v: jnp.where(v > 0, v, 0.01 * v)
    ax = jnp.einsum('bij,bjf->bif', adj, x)
    h1 = jax.nn.relu(x @ w1root + ax @ w1rel + b1)
    ah1 = jnp.einsum('bij,bjf->bif', adj, h1)
    h2 = jax.nn.relu(h1 @ w2root + ah1 @ w2rel + b2)
    pg = jnp.sum(h2.mean(axis=1) * wg, axis=-1, keepdims=True) + bg

    npad = tfeat.shape[1]
    mask = (jnp.arange(npad) > 0).astype(jnp.float32)[None, :, None]

    def tconv(h, ws, wl, wr, b):
        return (mask * (h @ ws + b)
                + jnp.einsum('ij,bjc->bic', sel_l, h @ wl)
                + jnp.einsum('ij,bjc->bic', sel_r, h @ wr))

    def tnorm(h):
        n = h.shape[1] * h.shape[2]
        mean = jnp.mean(h, axis=(1, 2), keepdims=True)
        var = jnp.sum((h - mean) ** 2, axis=(1, 2), keepdims=True) / (n - 1)
        return (h - mean) / (jnp.sqrt(var) + 1e-5)

    t1 = leaky(tnorm(tconv(tfeat, tw1s, tw1l, tw1r, tb1)))
    t2 = tnorm(tconv(t1, tw2s, tw2l, tw2r, tb2))
    pooled = jnp.max(t2, axis=1)
    m1 = leaky(pooled @ w3 + b3)
    neo = jnp.sum(m1 * w4, axis=-1, keepdims=True) + b4
    return wc[:, 0:1] * (wmix[:, 0:1] * pg) + wc[:, 1:2] * (wmix[:, 1:2] * neo) + bc


if __name__ == "__main__":
    key = jax.random.PRNGKey(0)
    B = 32                    # batch_size (2 grid steps of SPS=16 samples each)
    F_PG = 6                  # pg_input_feature_dim
    F_NEO = 5                 # neo4j_input_feature_dim
    NODES_PER_GRAPH = 5       # GNN nodes per graph
    NT = 7                    # real nodes per neo4j tree (complete binary tree); padded = NT+1

    keys = jax.random.split(key, 32)
    _ki = iter(keys)

    def rnd(shape, scale=0.1):
        return (scale * jax.random.normal(next(_ki), shape)).astype(jnp.float32)

    # -------- pg graph batch: per-graph features + per-graph adjacency --------
    x = rnd((B, NODES_PER_GRAPH, F_PG), 1.0)
    adj = np.zeros((B, NODES_PER_GRAPH, NODES_PER_GRAPH), np.float32)
    for b in range(B):                                  # bidirectional chain per graph
        for i in range(NODES_PER_GRAPH - 1):
            adj[b, i + 1, i] = 1.0
            adj[b, i, i + 1] = 1.0
    adj = jnp.asarray(adj)

    # -------- neo4j tree batch: padded features + static child selectors --------
    tfeat = rnd((B, NT + 1, F_NEO), 1.0)
    tfeat = tfeat.at[:, 0, :].set(0.0)                  # index 0 = "no child" zero node
    left = [(2 * i + 2) if (2 * i + 1) < NT else 0 for i in range(NT)]
    right = [(2 * i + 3) if (2 * i + 2) < NT else 0 for i in range(NT)]
    sel_left = np.zeros((NT + 1, NT + 1), np.float32)
    sel_right = np.zeros((NT + 1, NT + 1), np.float32)
    for i in range(NT):
        sel_left[i + 1, left[i]] = 1.0
        sel_right[i + 1, right[i]] = 1.0
    sel_left = jnp.asarray(sel_left)
    sel_right = jnp.asarray(sel_right)

    # -------- deterministic parameters (same shapes as the torch module) --------
    W1root, W1rel, b1 = rnd((F_PG, 16)), rnd((F_PG, 16)), rnd((1, 16))
    W2root, W2rel, b2 = rnd((16, 16)), rnd((16, 16)), rnd((1, 16))
    wg, bg = rnd((1, 16)), rnd((1, 1))
    TW1s, TW1l, TW1r, tb1 = rnd((F_NEO, 32)), rnd((F_NEO, 32)), rnd((F_NEO, 32)), rnd((1, 32))
    TW2s, TW2l, TW2r, tb2 = rnd((32, 16)), rnd((32, 16)), rnd((32, 16)), rnd((1, 16))
    W3, b3 = rnd((16, 8)), rnd((1, 8))
    w4, b4 = rnd((1, 8)), rnd((1, 1))
    wmix = jnp.array([[0.5, 0.5]], jnp.float32)         # self.weights
    wc, bc = rnd((1, 2)), rnd((1, 1))                   # self.linear

    params = (W1root, W1rel, b1, W2root, W2rel, b2, wg, bg,
              TW1s, TW1l, TW1r, tb1, TW2s, TW2l, TW2r, tb2,
              W3, b3, w4, b4, wmix, wc, bc)

    out = lero_cross_forward(x, adj, tfeat, sel_left, sel_right, *params, sps=16)
    out = jax.block_until_ready(out)
    assert out.shape == (B, 1)

    ref = reference_forward(x, adj, tfeat, sel_left, sel_right, *params)
    max_err = float(jnp.max(jnp.abs(out - ref)))
    assert max_err < 1e-4, f"mismatch vs pure-JAX reference: {max_err}"
    print("KERNEL_OK")
</pallas_src>

<mosaic_0001>
module attributes {stable_mosaic.version = 11 : i64} {
  func.func @kernel(%arg0: i32, %arg1: memref<80x8xf32, #tpu.memory_space<vmem>>, %arg2: memref<1x80x80xf32, #tpu.memory_space<vmem>>, %arg3: memref<128x8xf32, #tpu.memory_space<vmem>>, %arg4: memref<2x128x128xf32, #tpu.memory_space<vmem>>, %arg5: memref<16x80xf32, #tpu.memory_space<vmem>>, %arg6: memref<16x128xf32, #tpu.memory_space<vmem>>, %arg7: memref<128x16xf32, #tpu.memory_space<vmem>>, %arg8: memref<80x128xf32, #tpu.memory_space<vmem>>, %arg9: memref<16x128xf32, #tpu.memory_space<vmem>>, %arg10: memref<16x128xf32, #tpu.memory_space<vmem>>) attributes {dimension_semantics = [#tpu.dimension_semantics<parallel>], iteration_bounds = array<i64: 2>, scalar_prefetch = 0 : i64, scratch_operands = 0 : i64, tpu.core_type = #tpu.core_type<tc>, window_params = [{transform_indices = @transform_0, window_bounds = array<i64: 80, 8>}, {transform_indices = @transform_1, window_bounds = array<i64: 1, 80, 80>}, {transform_indices = @transform_2, window_bounds = array<i64: 128, 8>}, {pipeline_mode = #tpu.pipeline_mode<synchronous>, transform_indices = @transform_3, window_bounds = array<i64: 2, 128, 128>}, {pipeline_mode = #tpu.pipeline_mode<synchronous>, transform_indices = @transform_4, window_bounds = array<i64: 16, 80>}, {pipeline_mode = #tpu.pipeline_mode<synchronous>, transform_indices = @transform_5, window_bounds = array<i64: 16, 128>}, {pipeline_mode = #tpu.pipeline_mode<synchronous>, transform_indices = @transform_6, window_bounds = array<i64: 128, 16>}, {pipeline_mode = #tpu.pipeline_mode<synchronous>, transform_indices = @transform_7, window_bounds = array<i64: 80, 128>}, {pipeline_mode = #tpu.pipeline_mode<synchronous>, transform_indices = @transform_8, window_bounds = array<i64: 16, 128>}, {transform_indices = @transform_9, window_bounds = array<i64: 16, 128>}]} {
    %c0 = arith.constant 0 : index
    %c0_0 = arith.constant 0 : index
    %0 = vector.load %arg8[%c0, %c0_0] : memref<80x128xf32, #tpu.memory_space<vmem>>, vector<80x128xf32>
    %c0_1 = arith.constant 0 : index
    %c0_2 = arith.constant 0 : index
    %1 = vector.load %arg9[%c0_1, %c0_2] : memref<16x128xf32, #tpu.memory_space<vmem>>, vector<16x128xf32>
    %2 = vector.extract_strided_slice %1 {offsets = [0, 0], sizes = [1, 16], strides = [1, 1]} : vector<16x128xf32> to vector<1x16xf32>
    %3 = vector.extract_strided_slice %1 {offsets = [1, 0], sizes = [1, 16], strides = [1, 1]} : vector<16x128xf32> to vector<1x16xf32>
    %4 = vector.extract_strided_slice %1 {offsets = [2, 0], sizes = [1, 32], strides = [1, 1]} : vector<16x128xf32> to vector<1x32xf32>
    %5 = vector.extract_strided_slice %1 {offsets = [3, 0], sizes = [1, 16], strides = [1, 1]} : vector<16x128xf32> to vector<1x16xf32>
    %6 = vector.extract_strided_slice %1 {offsets = [4, 0], sizes = [1, 8], strides = [1, 1]} : vector<16x128xf32> to vector<1x8xf32>
    %7 = vector.extract_strided_slice %1 {offsets = [5, 0], sizes = [1, 16], strides = [1, 1]} : vector<16x128xf32> to vector<1x16xf32>
    %8 = vector.extract_strided_slice %1 {offsets = [6, 0], sizes = [1, 8], strides = [1, 1]} : vector<16x128xf32> to vector<1x8xf32>
    %9 = vector.extract_strided_slice %1 {offsets = [7, 0], sizes = [1, 1], strides = [1, 1]} : vector<16x128xf32> to vector<1x1xf32>
    %10 = vector.extract_strided_slice %1 {offsets = [8, 0], sizes = [1, 1], strides = [1, 1]} : vector<16x128xf32> to vector<1x1xf32>
    %c0_3 = arith.constant 0 : index
    %c0_4 = arith.constant 0 : index
    %11 = vector.load %arg1[%c0_3, %c0_4] : memref<80x8xf32, #tpu.memory_space<vmem>>, vector<80x8xf32>
    %c0_5 = arith.constant 0 : index
    %c0_6 = arith.constant 0 : index
    %c0_7 = arith.constant 0 : index
    %12 = vector.load %arg2[%c0_5, %c0_6, %c0_7] : memref<1x80x80xf32, #tpu.memory_space<vmem>>, vector<1x80x80xf32>
    %13 = vector.shape_cast %12 : vector<1x80x80xf32> to vector<80x80xf32>
    %14 = vector.extract_strided_slice %0 {offsets = [0, 0], sizes = [8, 32], strides = [1, 1]} : vector<80x128xf32> to vector<8x32xf32>
    %15 = vector.extract_strided_slice %0 {offsets = [8, 0], sizes = [16, 32], strides = [1, 1]} : vector<80x128xf32> to vector<16x32xf32>
    %cst = arith.constant dense<0.000000e+00> : vector<80x32xf32>
    %16 = tpu.matmul %11, %14, %cst {dimension_numbers = #tpu.dot_dimension_numbers<[1], [0], [0], [1], [0, 0, 1, 1], [], []>} : vector<80x8xf32>, vector<8x32xf32>, vector<80x32xf32> -> vector<80x32xf32>
    %17 = vector.extract_strided_slice %16 {offsets = [0, 0], sizes = [80, 16], strides = [1, 1]} : vector<80x32xf32> to vector<80x16xf32>
    %18 = vector.extract_strided_slice %16 {offsets = [0, 16], sizes = [80, 16], strides = [1, 1]} : vector<80x32xf32> to vector<80x16xf32>
    %cst_8 = arith.constant dense<0.000000e+00> : vector<80x16xf32>
    %19 = tpu.matmul %13, %18, %cst_8 {dimension_numbers = #tpu.dot_dimension_numbers<[1], [0], [0], [1], [0, 0, 1, 1], [], []>} : vector<80x80xf32>, vector<80x16xf32>, vector<80x16xf32> -> vector<80x16xf32>
    %20 = arith.addf %17, %19 : vector<80x16xf32>
    %21 = vector.broadcast %2 : vector<1x16xf32> to vector<80x16xf32>
    %22 = arith.addf %20, %21 : vector<80x16xf32>
    %cst_9 = arith.constant 0.000000e+00 : f32
    %23 = vector.broadcast %cst_9 : f32 to vector<80x16xf32>
    %24 = arith.maximumf %22, %23 : vector<80x16xf32>
    %cst_10 = arith.constant dense<0.000000e+00> : vector<80x32xf32>
    %25 = tpu.matmul %24, %15, %cst_10 {dimension_numbers = #tpu.dot_dimension_numbers<[1], [0], [0], [1], [0, 0, 1, 1], [], []>} : vector<80x16xf32>, vector<16x32xf32>, vector<80x32xf32> -> vector<80x32xf32>
    %26 = vector.extract_strided_slice %25 {offsets = [0, 0], sizes = [80, 16], strides = [1, 1]} : vector<80x32xf32> to vector<80x16xf32>
    %27 = vector.extract_strided_slice %25 {offsets = [0, 16], sizes = [80, 16], strides = [1, 1]} : vector<80x32xf32> to vector<80x16xf32>
    %cst_11 = arith.constant dense<0.000000e+00> : vector<80x16xf32>
    %28 = tpu.matmul %13, %27, %cst_11 {dimension_numbers = #tpu.dot_dimension_numbers<[1], [0], [0], [1], [0, 0, 1, 1], [], []>} : vector<80x80xf32>, vector<80x16xf32>, vector<80x16xf32> -> vector<80x16xf32>
    %29 = arith.addf %26, %28 : vector<80x16xf32>
    %30 = vector.broadcast %3 : vector<1x16xf32> to vector<80x16xf32>
    %31 = arith.addf %29, %30 : vector<80x16xf32>
    %cst_12 = arith.constant 0.000000e+00 : f32
    %32 = vector.broadcast %cst_12 : f32 to vector<80x16xf32>
    %33 = arith.maximumf %31, %32 : vector<80x16xf32>
    %c0_13 = arith.constant 0 : index
    %c0_14 = arith.constant 0 : index
    %34 = vector.load %arg5[%c0_13, %c0_14] : memref<16x80xf32, #tpu.memory_space<vmem>>, vector<16x80xf32>
    %cst_15 = arith.constant dense<0.000000e+00> : vector<16x16xf32>
    %35 = tpu.matmul %34, %33, %cst_15 {dimension_numbers = #tpu.dot_dimension_numbers<[1], [0], [0], [1], [0, 0, 1, 1], [], []>} : vector<16x80xf32>, vector<80x16xf32>, vector<16x16xf32> -> vector<16x16xf32>
    %36 = vector.broadcast %7 : vector<1x16xf32> to vector<16x16xf32>
    %37 = arith.mulf %35, %36 : vector<16x16xf32>
    %cst_16 = arith.constant dense<0.000000e+00> : vector<16xf32>
    %38 = vector.multi_reduction <add>, %37, %cst_16 [1] : vector<16x16xf32> to vector<16xf32>
    %39 = vector.shape_cast %38 : vector<16xf32> to vector<16x1xf32>
    %40 = vector.broadcast %9 : vector<1x1xf32> to vector<16x1xf32>
    %41 = arith.addf %39, %40 : vector<16x1xf32>
    %c0_17 = arith.constant 0 : index
    %c0_18 = arith.constant 0 : index
    %42 = vector.load %arg3[%c0_17, %c0_18] : memref<128x8xf32, #tpu.memory_space<vmem>>, vector<128x8xf32>
    %c0_19 = arith.constant 0 : index
    %c0_20 = arith.constant 0 : index
    %c0_21 = arith.constant 0 : index
    %43 = vector.load %arg4[%c0_19, %c0_20, %c0_21] : memref<2x128x128xf32, #tpu.memory_space<vmem>>, vector<1x128x128xf32>
    %44 = vector.shape_cast %43 : vector<1x128x128xf32> to vector<128x128xf32>
    %c1 = arith.constant 1 : index
    %c0_22 = arith.constant 0 : index
    %c0_23 = arith.constant 0 : index
    %45 = vector.load %arg4[%c1, %c0_22, %c0_23] : memref<2x128x128xf32, #tpu.memory_space<vmem>>, vector<1x128x128xf32>
    %46 = vector.shape_cast %45 : vector<1x128x128xf32> to vector<128x128xf32>
    %c0_24 = arith.constant 0 : index
    %c0_25 = arith.constant 0 : index
    %47 = vector.load %arg6[%c0_24, %c0_25] : memref<16x128xf32, #tpu.memory_space<vmem>>, vector<16x128xf32>
    %c0_26 = arith.constant 0 : index
    %c0_27 = arith.constant 0 : index
    %48 = vector.load %arg7[%c0_26, %c0_27] : memref<128x16xf32, #tpu.memory_space<vmem>>, vector<128x16xf32>
    %49 = tpu.iota {dimensions = array<i32: 0>} : vector<128x1xi32>
    %c16_i32 = arith.constant 16 : i32
    %50 = vector.broadcast %c16_i32 : i32 to vector<128x1xi32>
    %51 = arith.cmpi sge, %49, %50 : vector<128x1xi32>
    %52 = arith.extui %51 : vector<128x1xi1> to vector<128x1xi32>
    %53 = arith.sitofp %52 : vector<128x1xi32> to vector<128x1xf32>
    %54 = vector.extract_strided_slice %0 {offsets = [24, 0], sizes = [8, 96], strides = [1, 1]} : vector<80x128xf32> to vector<8x96xf32>
    %55 = vector.extract_strided_slice %0 {offsets = [32, 0], sizes = [32, 48], strides = [1, 1]} : vector<80x128xf32> to vector<32x48xf32>
    %56 = vector.extract_strided_slice %0 {offsets = [64, 0], sizes = [16, 8], strides = [1, 1]} : vector<80x128xf32> to vector<16x8xf32>
    %cst_28 = arith.constant dense<0.000000e+00> : vector<128x96xf32>
    %57 = tpu.matmul %42, %54, %cst_28 {dimension_numbers = #tpu.dot_dimension_numbers<[1], [0], [0], [1], [0, 0, 1, 1], [], []>} : vector<128x8xf32>, vector<8x96xf32>, vector<128x96xf32> -> vector<128x96xf32>
    %58 = vector.extract_strided_slice %57 {offsets = [0, 0], sizes = [128, 32], strides = [1, 1]} : vector<128x96xf32> to vector<128x32xf32>
    %59 = vector.extract_strided_slice %57 {offsets = [0, 32], sizes = [128, 32], strides = [1, 1]} : vector<128x96xf32> to vector<128x32xf32>
    %cst_29 = arith.constant dense<0.000000e+00> : vector<128x32xf32>
    %60 = tpu.matmul %44, %59, %cst_29 {dimension_numbers = #tpu.dot_dimension_numbers<[1], [0], [0], [1], [0, 0, 1, 1], [], []>} : vector<128x128xf32>, vector<128x32xf32>, vector<128x32xf32> -> vector<128x32xf32>
    %61 = vector.extract_strided_slice %57 {offsets = [0, 64], sizes = [128, 32], strides = [1, 1]} : vector<128x96xf32> to vector<128x32xf32>
    %cst_30 = arith.constant dense<0.000000e+00> : vector<128x32xf32>
    %62 = tpu.matmul %46, %61, %cst_30 {dimension_numbers = #tpu.dot_dimension_numbers<[1], [0], [0], [1], [0, 0, 1, 1], [], []>} : vector<128x128xf32>, vector<128x32xf32>, vector<128x32xf32> -> vector<128x32xf32>
    %63 = vector.broadcast %4 : vector<1x32xf32> to vector<128x32xf32>
    %64 = arith.addf %58, %63 : vector<128x32xf32>
    %65 = vector.broadcast %53 : vector<128x1xf32> to vector<128x32xf32>
    %66 = arith.mulf %65, %64 : vector<128x32xf32>
    %67 = arith.addf %66, %60 : vector<128x32xf32>
    %68 = arith.addf %67, %62 : vector<128x32xf32>
    %cst_31 = arith.constant dense<0.000000e+00> : vector<16x32xf32>
    %69 = tpu.matmul %47, %68, %cst_31 {dimension_numbers = #tpu.dot_dimension_numbers<[1], [0], [0], [1], [0, 0, 1, 1], [], []>} : vector<16x128xf32>, vector<128x32xf32>, vector<16x32xf32> -> vector<16x32xf32>
    %cst_32 = arith.constant dense<0.000000e+00> : vector<16xf32>
    %70 = vector.multi_reduction <add>, %69, %cst_32 [1] : vector<16x32xf32> to vector<16xf32>
    %71 = vector.shape_cast %70 : vector<16xf32> to vector<16x1xf32>
    %cst_33 = arith.constant 3.906250e-03 : f32
    %72 = vector.broadcast %cst_33 : f32 to vector<16x1xf32>
    %73 = arith.mulf %71, %72 : vector<16x1xf32>
    %cst_34 = arith.constant dense<0.000000e+00> : vector<128x1xf32>
    %74 = tpu.matmul %48, %73, %cst_34 {dimension_numbers = #tpu.dot_dimension_numbers<[1], [0], [0], [1], [0, 0, 1, 1], [], []>} : vector<128x16xf32>, vector<16x1xf32>, vector<128x1xf32> -> vector<128x1xf32>
    %75 = vector.broadcast %74 : vector<128x1xf32> to vector<128x32xf32>
    %76 = arith.subf %68, %75 : vector<128x32xf32>
    %77 = arith.mulf %76, %76 : vector<128x32xf32>
    %cst_35 = arith.constant dense<0.000000e+00> : vector<16x32xf32>
    %78 = tpu.matmul %47, %77, %cst_35 {dimension_numbers = #tpu.dot_dimension_numbers<[1], [0], [0], [1], [0, 0, 1, 1], [], []>} : vector<16x128xf32>, vector<128x32xf32>, vector<16x32xf32> -> vector<16x32xf32>
    %cst_36 = arith.constant dense<0.000000e+00> : vector<16xf32>
    %79 = vector.multi_reduction <add>, %78, %cst_36 [1] : vector<16x32xf32> to vector<16xf32>
    %80 = vector.shape_cast %79 : vector<16xf32> to vector<16x1xf32>
    %cst_37 = arith.constant 0.00392156886 : f32
    %81 = vector.broadcast %cst_37 : f32 to vector<16x1xf32>
    %82 = arith.mulf %80, %81 : vector<16x1xf32>
    %83 = math.sqrt %82 : vector<16x1xf32>
    %cst_38 = arith.constant 9.99999974E-6 : f32
    %84 = vector.broadcast %cst_38 : f32 to vector<16x1xf32>
    %85 = arith.addf %83, %84 : vector<16x1xf32>
    %86 = tpu.reciprocal %85 : vector<16x1xf32> -> vector<16x1xf32>
    %cst_39 = arith.constant dense<0.000000e+00> : vector<128x1xf32>
    %87 = tpu.matmul %48, %86, %cst_39 {dimension_numbers = #tpu.dot_dimension_numbers<[1], [0], [0], [1], [0, 0, 1, 1], [], []>} : vector<128x16xf32>, vector<16x1xf32>, vector<128x1xf32> -> vector<128x1xf32>
    %88 = vector.broadcast %87 : vector<128x1xf32> to vector<128x32xf32>
    %89 = arith.mulf %76, %88 : vector<128x32xf32>
    %cst_40 = arith.constant 0.000000e+00 : f32
    %90 = vector.broadcast %cst_40 : f32 to vector<128x32xf32>
    %91 = arith.cmpf ogt, %89, %90 : vector<128x32xf32>
    %cst_41 = arith.constant 0.00999999977 : f32
    %92 = vector.broadcast %cst_41 : f32 to vector<128x32xf32>
    %93 = arith.mulf %92, %89 : vector<128x32xf32>
    %94 = arith.select %91, %89, %93 : vector<128x32xi1>, vector<128x32xf32>
    %cst_42 = arith.constant dense<0.000000e+00> : vector<128x48xf32>
    %95 = tpu.matmul %94, %55, %cst_42 {dimension_numbers = #tpu.dot_dimension_numbers<[1], [0], [0], [1], [0, 0, 1, 1], [], []>} : vector<128x32xf32>, vector<32x48xf32>, vector<128x48xf32> -> vector<128x48xf32>
    %96 = vector.extract_strided_slice %95 {offsets = [0, 0], sizes = [128, 16], strides = [1, 1]} : vector<128x48xf32> to vector<128x16xf32>
    %97 = vector.extract_strided_slice %95 {offsets = [0, 16], sizes = [128, 16], strides = [1, 1]} : vector<128x48xf32> to vector<128x16xf32>
    %cst_43 = arith.constant dense<0.000000e+00> : vector<128x16xf32>
    %98 = tpu.matmul %44, %97, %cst_43 {dimension_numbers = #tpu.dot_dimension_numbers<[1], [0], [0], [1], [0, 0, 1, 1], [], []>} : vector<128x128xf32>, vector<128x16xf32>, vector<128x16xf32> -> vector<128x16xf32>
    %99 = vector.extract_strided_slice %95 {offsets = [0, 32], sizes = [128, 16], strides = [1, 1]} : vector<128x48xf32> to vector<128x16xf32>
    %cst_44 = arith.constant dense<0.000000e+00> : vector<128x16xf32>
    %100 = tpu.matmul %46, %99, %cst_44 {dimension_numbers = #tpu.dot_dimension_numbers<[1], [0], [0], [1], [0, 0, 1, 1], [], []>} : vector<128x128xf32>, vector<128x16xf32>, vector<128x16xf32> -> vector<128x16xf32>
    %101 = vector.broadcast %5 : vector<1x16xf32> to vector<128x16xf32>
    %102 = arith.addf %96, %101 : vector<128x16xf32>
    %103 = vector.broadcast %53 : vector<128x1xf32> to vector<128x16xf32>
    %104 = arith.mulf %103, %102 : vector<128x16xf32>
    %105 = arith.addf %104, %98 : vector<128x16xf32>
    %106 = arith.addf %105, %100 : vector<128x16xf32>
    %cst_45 = arith.constant dense<0.000000e+00> : vector<16x16xf32>
    %107 = tpu.matmul %47, %106, %cst_45 {dimension_numbers = #tpu.dot_dimension_numbers<[1], [0], [0], [1], [0, 0, 1, 1], [], []>} : vector<16x128xf32>, vector<128x16xf32>, vector<16x16xf32> -> vector<16x16xf32>
    %cst_46 = arith.constant dense<0.000000e+00> : vector<16xf32>
    %108 = vector.multi_reduction <add>, %107, %cst_46 [1] : vector<16x16xf32> to vector<16xf32>
    %109 = vector.shape_cast %108 : vector<16xf32> to vector<16x1xf32>
    %cst_47 = arith.constant 7.812500e-03 : f32
    %110 = vector.broadcast %cst_47 : f32 to vector<16x1xf32>
    %111 = arith.mulf %109, %110 : vector<16x1xf32>
    %cst_48 = arith.constant dense<0.000000e+00> : vector<128x1xf32>
    %112 = tpu.matmul %48, %111, %cst_48 {dimension_numbers = #tpu.dot_dimension_numbers<[1], [0], [0], [1], [0, 0, 1, 1], [], []>} : vector<128x16xf32>, vector<16x1xf32>, vector<128x1xf32> -> vector<128x1xf32>
    %113 = vector.broadcast %112 : vector<128x1xf32> to vector<128x16xf32>
    %114 = arith.subf %106, %113 : vector<128x16xf32>
    %115 = arith.mulf %114, %114 : vector<128x16xf32>
    %cst_49 = arith.constant dense<0.000000e+00> : vector<16x16xf32>
    %116 = tpu.matmul %47, %115, %cst_49 {dimension_numbers = #tpu.dot_dimension_numbers<[1], [0], [0], [1], [0, 0, 1, 1], [], []>} : vector<16x128xf32>, vector<128x16xf32>, vector<16x16xf32> -> vector<16x16xf32>
    %cst_50 = arith.constant dense<0.000000e+00> : vector<16xf32>
    %117 = vector.multi_reduction <add>, %116, %cst_50 [1] : vector<16x16xf32> to vector<16xf32>
    %118 = vector.shape_cast %117 : vector<16xf32> to vector<16x1xf32>
    %cst_51 = arith.constant 0.00787401571 : f32
    %119 = vector.broadcast %cst_51 : f32 to vector<16x1xf32>
    %120 = arith.mulf %118, %119 : vector<16x1xf32>
    %121 = math.sqrt %120 : vector<16x1xf32>
    %cst_52 = arith.constant 9.99999974E-6 : f32
    %122 = vector.broadcast %cst_52 : f32 to vector<16x1xf32>
    %123 = arith.addf %121, %122 : vector<16x1xf32>
    %124 = tpu.reciprocal %123 : vector<16x1xf32> -> vector<16x1xf32>
    %cst_53 = arith.constant dense<0.000000e+00> : vector<128x1xf32>
    %125 = tpu.matmul %48, %124, %cst_53 {dimension_numbers = #tpu.dot_dimension_numbers<[1], [0], [0], [1], [0, 0, 1, 1], [], []>} : vector<128x16xf32>, vector<16x1xf32>, vector<128x1xf32> -> vector<128x1xf32>
    %126 = vector.broadcast %125 : vector<128x1xf32> to vector<128x16xf32>
    %127 = arith.mulf %114, %126 : vector<128x16xf32>
    %128 = vector.extract_strided_slice %127 {offsets = [0, 0], sizes = [16, 16], strides = [1, 1]} : vector<128x16xf32> to vector<16x16xf32>
    %129 = vector.extract_strided_slice %127 {offsets = [16, 0], sizes = [16, 16], strides = [1, 1]} : vector<128x16xf32> to vector<16x16xf32>
    %130 = arith.maximumf %128, %129 : vector<16x16xf32>
    %131 = vector.extract_strided_slice %127 {offsets = [32, 0], sizes = [16, 16], strides = [1, 1]} : vector<128x16xf32> to vector<16x16xf32>
    %132 = arith.maximumf %130, %131 : vector<16x16xf32>
    %133 = vector.extract_strided_slice %127 {offsets = [48, 0], sizes = [16, 16], strides = [1, 1]} : vector<128x16xf32> to vector<16x16xf32>
    %134 = arith.maximumf %132, %133 : vector<16x16xf32>
    %135 = vector.extract_strided_slice %127 {offsets = [64, 0], sizes = [16, 16], strides = [1, 1]} : vector<128x16xf32> to vector<16x16xf32>
    %136 = arith.maximumf %134, %135 : vector<16x16xf32>
    %137 = vector.extract_strided_slice %127 {offsets = [80, 0], sizes = [16, 16], strides = [1, 1]} : vector<128x16xf32> to vector<16x16xf32>
    %138 = arith.maximumf %136, %137 : vector<16x16xf32>
    %139 = vector.extract_strided_slice %127 {offsets = [96, 0], sizes = [16, 16], strides = [1, 1]} : vector<128x16xf32> to vector<16x16xf32>
    %140 = arith.maximumf %138, %139 : vector<16x16xf32>
    %141 = vector.extract_strided_slice %127 {offsets = [112, 0], sizes = [16, 16], strides = [1, 1]} : vector<128x16xf32> to vector<16x16xf32>
    %142 = arith.maximumf %140, %141 : vector<16x16xf32>
    %cst_54 = arith.constant dense<0.000000e+00> : vector<16x8xf32>
    %143 = tpu.matmul %142, %56, %cst_54 {dimension_numbers = #tpu.dot_dimension_numbers<[1], [0], [0], [1], [0, 0, 1, 1], [], []>} : vector<16x16xf32>, vector<16x8xf32>, vector<16x8xf32> -> vector<16x8xf32>
    %144 = vector.broadcast %6 : vector<1x8xf32> to vector<16x8xf32>
    %145 = arith.addf %143, %144 : vector<16x8xf32>
    %cst_55 = arith.constant 0.000000e+00 : f32
    %146 = vector.broadcast %cst_55 : f32 to vector<16x8xf32>
    %147 = arith.cmpf ogt, %145, %146 : vector<16x8xf32>
    %cst_56 = arith.constant 0.00999999977 : f32
    %148 = vector.broadcast %cst_56 : f32 to vector<16x8xf32>
    %149 = arith.mulf %148, %145 : vector<16x8xf32>
    %150 = arith.select %147, %145, %149 : vector<16x8xi1>, vector<16x8xf32>
    %151 = vector.broadcast %8 : vector<1x8xf32> to vector<16x8xf32>
    %152 = arith.mulf %150, %151 : vector<16x8xf32>
    %cst_57 = arith.constant dense<0.000000e+00> : vector<16xf32>
    %153 = vector.multi_reduction <add>, %152, %cst_57 [1] : vector<16x8xf32> to vector<16xf32>
    %154 = vector.shape_cast %153 : vector<16xf32> to vector<16x1xf32>
    %155 = vector.broadcast %10 : vector<1x1xf32> to vector<16x1xf32>
    %156 = arith.addf %154, %155 : vector<16x1xf32>
    %157 = arith.addf %41, %156 : vector<16x1xf32>
    %158 = vector.shape_cast %157 : vector<16x1xf32> to vector<16x1xf32>
    %159 = vector.broadcast %158 : vector<16x1xf32> to vector<16x128xf32>
    %c0_58 = arith.constant 0 : index
    %c0_59 = arith.constant 0 : index
    %160 = vector.load %arg10[%c0_58, %c0_59] : memref<16x128xf32, #tpu.memory_space<vmem>>, vector<16x128xf32>
    tpu.vector_store %arg10[%c0_58, %c0_59], %159 {strides = array<i32>} : memref<16x128xf32, #tpu.memory_space<vmem>>, vector<16x128xf32>,
    return
  }
  func.func @transform_0(%arg0: i32) -> (i32, i32) {
    %c0_i32 = arith.constant 0 : i32
    %c0_i32_0 = arith.constant 0 : i32
    return %arg0, %c0_i32 : i32, i32
  }
  func.func @transform_1(%arg0: i32) -> (i32, i32, i32) {
    %c0_i32 = arith.constant 0 : i32
    %c0_i32_0 = arith.constant 0 : i32
    %c0_i32_1 = arith.constant 0 : i32
    return %arg0, %c0_i32, %c0_i32_0 : i32, i32, i32
  }
  func.func @transform_2(%arg0: i32) -> (i32, i32) {
    %c0_i32 = arith.constant 0 : i32
    %c0_i32_0 = arith.constant 0 : i32
    return %arg0, %c0_i32 : i32, i32
  }
  func.func @transform_3(%arg0: i32) -> (i32, i32, i32) {
    %c0_i32 = arith.constant 0 : i32
    %c0_i32_0 = arith.constant 0 : i32
    %c0_i32_1 = arith.constant 0 : i32
    %c0_i32_2 = arith.constant 0 : i32
    return %c0_i32, %c0_i32_0, %c0_i32_1 : i32, i32, i32
  }
  func.func @transform_4(%arg0: i32) -> (i32, i32) {
    %c0_i32 = arith.constant 0 : i32
    %c0_i32_0 = arith.constant 0 : i32
    %c0_i32_1 = arith.constant 0 : i32
    return %c0_i32, %c0_i32_0 : i32, i32
  }
  func.func @transform_5(%arg0: i32) -> (i32, i32) {
    %c0_i32 = arith.constant 0 : i32
    %c0_i32_0 = arith.constant 0 : i32
    %c0_i32_1 = arith.constant 0 : i32
    return %c0_i32, %c0_i32_0 : i32, i32
  }
  func.func @transform_6(%arg0: i32) -> (i32, i32) {
    %c0_i32 = arith.constant 0 : i32
    %c0_i32_0 = arith.constant 0 : i32
    %c0_i32_1 = arith.constant 0 : i32
    return %c0_i32, %c0_i32_0 : i32, i32
  }
  func.func @transform_7(%arg0: i32) -> (i32, i32) {
    %c0_i32 = arith.constant 0 : i32
    %c0_i32_0 = arith.constant 0 : i32
    %c0_i32_1 = arith.constant 0 : i32
    return %c0_i32, %c0_i32_0 : i32, i32
  }
  func.func @transform_8(%arg0: i32) -> (i32, i32) {
    %c0_i32 = arith.constant 0 : i32
    %c0_i32_0 = arith.constant 0 : i32
    %c0_i32_1 = arith.constant 0 : i32
    return %c0_i32, %c0_i32_0 : i32, i32
  }
  func.func @transform_9(%arg0: i32) -> (i32, i32) {
    %c0_i32 = arith.constant 0 : i32
    %c0_i32_0 = arith.constant 0 : i32
    return %arg0, %c0_i32 : i32, i32
  }
}

</mosaic_0001>

<llo_original>
// kernel: tpu_custom_call.1
$region0: #{tpu_custom_call.1}
  #allocation0 [shape = 'u32[]', space=smem, size = 0x4, offset = 0x4, fixed_abs, tag = 'smem constant byte address 0x4 - core index']
  #allocation1 [shape = 'u32[72,128]{1,0:T(1,128)}', space=vmem, size = 0x9000, scoped, tag = 'internal scratch']
  %s0 = inlined_call_operand.vmem [shape: f32[160,8], index: 0, kind: input, shape index: {}]
  %s1 = inlined_call_operand.vmem [shape: f32[2,80,80], index: 1, kind: input, shape index: {}]
  %s2 = inlined_call_operand.vmem [shape: f32[256,8], index: 2, kind: input, shape index: {}]
  %s3 = inlined_call_operand.vmem [shape: f32[2,128,128], index: 3, kind: input, shape index: {}]
  %s4 = inlined_call_operand.vmem [shape: f32[16,80], index: 4, kind: input, shape index: {}]
  %s5 = inlined_call_operand.vmem [shape: f32[16,128], index: 5, kind: input, shape index: {}]
  %s6 = inlined_call_operand.vmem [shape: f32[128,16], index: 6, kind: input, shape index: {}]
  %s7 = inlined_call_operand.vmem [shape: f32[80,128], index: 7, kind: input, shape index: {}]
  %s8 = inlined_call_operand.vmem [shape: f32[16,128], index: 8, kind: input, shape index: {}]
  %s9 = inlined_call_operand.hbm [shape: f32[32,128], index: 9, kind: output, shape index: {}]
  %s10 = sld [smem:[#allocation0]]
  $region69: #{tpu_custom_call.1} parent=0
    _
  %s12 = ssub.s32 1, %s10
  %s13 = scalar_select 0, %s12, %s10
  $region1: #{tpu_custom_call.1} parent=0
    #allocation2 [shape = 'u8[16384]{0}', space=vmem, size = 0x4000, scoped, tag = 'output window, operand 0']
    #allocation3 [shape = 's32[2]{0}', space=sflag, size = 0x8, scoped, tag = 'scoped memory for tpu_custom_call.1']
    %14 = vsyncpa [#allocation3], 0
    %s15 = scalar_lea.sflag [#allocation3], 1
    %16 = vsyncpa %s15, 0
    loop: start=0, step=1, limit=4
    $region2: #{tpu_custom_call.1} parent=1 // loop_pre_header
      _
    $region3: #{tpu_custom_call.1} parent=1 // loop_header
      %s18 = sphi 0, %s22
      %p19 = scmp.ge.s32.totalorder %s18, 4
      %s28 = sphi 0, %s30
      %s31 = sphi 0, %s28
      %s32 = sphi 0, %s31
      %s48 = sphi 0, %s32
      %s54 = sphi 0, %s56
      %s57 = sphi 0, %s54
      %s58 = sphi 0, %s57
      %s74 = sphi 0, %s58
      %s80 = sphi 0, %s82
      %s83 = sphi 0, %s80
      %s84 = sphi 0, %s83
      %s100 = sphi 0, %s84
      %s104 = sphi 0, %s104
      %s106 = sphi 0, %s104
      %s107 = sphi 0, %s106
      %s121 = sphi 0, %s107
      %s125 = sphi 0, %s125
      %s127 = sphi 0, %s125
      %s128 = sphi 0, %s127
      %s142 = sphi 0, %s128
      %s146 = sphi 0, %s146
      %s148 = sphi 0, %s146
      %s149 = sphi 0, %s148
      %s163 = sphi 0, %s149
      %s167 = sphi 0, %s167
      %s169 = sphi 0, %s167
      %s170 = sphi 0, %s169
      %s184 = sphi 0, %s170
      %s188 = sphi 0, %s188
      %s190 = sphi 0, %s188
      %s191 = sphi 0, %s190
      %s205 = sphi 0, %s191
      %s209 = sphi 0, %s209
      %s211 = sphi 0, %s209
      %s212 = sphi 0, %s211
      %s226 = sphi 0, %s212
      %s232 = sphi 0, %s234
      %s235 = sphi 0, %s232
      %s236 = sphi 0, %s235
      %s252 = sphi 0, %s236
    $region4: #{tpu_custom_call.1} parent=1 // loop_header_branch
      %21 = sbr.rel (%p19) target = $region8
    $region5: #{tpu_custom_call.1} parent=1 // loop_body
      %s23 = ssub.s32 %s18, 1
      %s24 = ssub.s32 %s18, 2
      %s25 = sadd.s32 %s18, 1
      %s26 = ssub.s32 %s18, %s25
      %p27 = scmp.eq.s32.totalorder %s26, 0
      %s29 = sadd.s32 %s28, 1
      %s30 = scalar_select %p27, %s28, %s29
      %p33 = pneg %p27
      %p34 = scmp.eq.s32.totalorder %s18, 1
      %p35 = por %p33, %p34
      %p36 = scmp.ne.s32.totalorder %s28, %s31
      %p37 = scmp.eq.s32.totalorder %s18, 0
      %p38 = por %p36, %p37
      %p39 = scmp.ne.s32.totalorder %s28, %s31
      %p40 = scmp.eq.s32.totalorder %s23, 1
      %p41 = por %p39, %p40
      %p42 = scmp.ne.s32.totalorder %s31, %s32
      %p43 = scmp.eq.s32.totalorder %s23, 0
      %p44 = por %p42, %p43
      %p45 = scmp.ne.s32.totalorder %s31, %s32
      %p46 = scmp.eq.s32.totalorder %s24, 1
      %p47 = por %p45, %p46
      %p49 = scmp.ne.s32.totalorder %s32, %s48
      %p50 = scmp.eq.s32.totalorder %s24, 0
      %p51 = por %p49, %p50
      %s52 = ssub.s32 %s18, %s25
      %p53 = scmp.eq.s32.totalorder %s52, 0
      %s55 = sadd.s32 %s54, 1
      %s56 = scalar_select %p53, %s54, %s55
      %p59 = pneg %p53
      %p60 = scmp.eq.s32.totalorder %s18, 1
      %p61 = por %p59, %p60
      %p62 = scmp.ne.s32.totalorder %s54, %s57
      %p63 = scmp.eq.s32.totalorder %s18, 0
      %p64 = por %p62, %p63
      %p65 = scmp.ne.s32.totalorder %s54, %s57
      %p66 = scmp.eq.s32.totalorder %s23, 1
      %p67 = por %p65, %p66
      %p68 = scmp.ne.s32.totalorder %s57, %s58
      %p69 = scmp.eq.s32.totalorder %s23, 0
      %p70 = por %p68, %p69
      %p71 = scmp.ne.s32.totalorder %s57, %s58
      %p72 = scmp.eq.s32.totalorder %s24, 1
      %p73 = por %p71, %p72
      %p75 = scmp.ne.s32.totalorder %s58, %s74
      %p76 = scmp.eq.s32.totalorder %s24, 0
      %p77 = por %p75, %p76
      %s78 = ssub.s32 %s18, %s25
      %p79 = scmp.eq.s32.totalorder %s78, 0
      %s81 = sadd.s32 %s80, 1
      %s82 = scalar_select %p79, %s80, %s81
      %p85 = pneg %p79
      %p86 = scmp.eq.s32.totalorder %s18, 1
      %p87 = por %p85, %p86
      %p88 = scmp.ne.s32.totalorder %s80, %s83
      %p89 = scmp.eq.s32.totalorder %s18, 0
      %p90 = por %p88, %p89
      %p91 = scmp.ne.s32.totalorder %s80, %s83
      %p92 = scmp.eq.s32.totalorder %s23, 1
      %p93 = por %p91, %p92
      %p94 = scmp.ne.s32.totalorder %s83, %s84
      %p95 = scmp.eq.s32.totalorder %s23, 0
      %p96 = por %p94, %p95
      %p97 = scmp.ne.s32.totalorder %s83, %s84
      %p98 = scmp.eq.s32.totalorder %s24, 1
      %p99 = por %p97, %p98
      %p101 = scmp.ne.s32.totalorder %s84, %s100
      %p102 = scmp.eq.s32.totalorder %s24, 0
      %p103 = por %p101, %p102
      %s105 = sadd.s32 %s104, 1
      %p108 = scmp.eq.s32.totalorder %s18, 1
      %p109 = scmp.ne.s32.totalorder %s104, %s106
      %p110 = scmp.eq.s32.totalorder %s18, 0
      %p111 = por %p109, %p110
      %p112 = scmp.ne.s32.totalorder %s104, %s106
      %p113 = scmp.eq.s32.totalorder %s23, 1
      %p114 = por %p112, %p113
      %p115 = scmp.ne.s32.totalorder %s106, %s107
      %p116 = scmp.eq.s32.totalorder %s23, 0
      %p117 = por %p115, %p116
      %p118 = scmp.ne.s32.totalorder %s106, %s107
      %p119 = scmp.eq.s32.totalorder %s24, 1
      %p120 = por %p118, %p119
      %p122 = scmp.ne.s32.totalorder %s107, %s121
      %p123 = scmp.eq.s32.totalorder %s24, 0
      %p124 = por %p122, %p123
      %s126 = sadd.s32 %s125, 1
      %p129 = scmp.eq.s32.totalorder %s18, 1
      %p130 = scmp.ne.s32.totalorder %s125, %s127
      %p131 = scmp.eq.s32.totalorder %s18, 0
      %p132 = por %p130, %p131
      %p133 = scmp.ne.s32.totalorder %s125, %s127
      %p134 = scmp.eq.s32.totalorder %s23, 1
      %p135 = por %p133, %p134
      %p136 = scmp.ne.s32.totalorder %s127, %s128
      %p137 = scmp.eq.s32.totalorder %s23, 0
      %p138 = por %p136, %p137
      %p139 = scmp.ne.s32.totalorder %s127, %s128
      %p140 = scmp.eq.s32.totalorder %s24, 1
      %p141 = por %p139, %p140
      %p143 = scmp.ne.s32.totalorder %s128, %s142
      %p144 = scmp.eq.s32.totalorder %s24, 0
      %p145 = por %p143, %p144
      %s147 = sadd.s32 %s146, 1
      %p150 = scmp.eq.s32.totalorder %s18, 1
      %p151 = scmp.ne.s32.totalorder %s146, %s148
      %p152 = scmp.eq.s32.totalorder %s18, 0
      %p153 = por %p151, %p152
      %p154 = scmp.ne.s32.totalorder %s146, %s148
      %p155 = scmp.eq.s32.totalorder %s23, 1
      %p156 = por %p154, %p155
      %p157 = scmp.ne.s32.totalorder %s148, %s149
      %p158 = scmp.eq.s32.totalorder %s23, 0
      %p159 = por %p157, %p158
      %p160 = scmp.ne.s32.totalorder %s148, %s149
      %p161 = scmp.eq.s32.totalorder %s24, 1
      %p162 = por %p160, %p161
      %p164 = scmp.ne.s32.totalorder %s149, %s163
      %p165 = scmp.eq.s32.totalorder %s24, 0
      %p166 = por %p164, %p165
      %s168 = sadd.s32 %s167, 1
      %p171 = scmp.eq.s32.totalorder %s18, 1
      %p172 = scmp.ne.s32.totalorder %s167, %s169
      %p173 = scmp.eq.s32.totalorder %s18, 0
      %p174 = por %p172, %p173
      %p175 = scmp.ne.s32.totalorder %s167, %s169
      %p176 = scmp.eq.s32.totalorder %s23, 1
      %p177 = por %p175, %p176
      %p178 = scmp.ne.s32.totalorder %s169, %s170
      %p179 = scmp.eq.s32.totalorder %s23, 0
      %p180 = por %p178, %p179
      %p181 = scmp.ne.s32.totalorder %s169, %s170
      %p182 = scmp.eq.s32.totalorder %s24, 1
      %p183 = por %p181, %p182
      %p185 = scmp.ne.s32.totalorder %s170, %s184
      %p186 = scmp.eq.s32.totalorder %s24, 0
      %p187 = por %p185, %p186
      %s189 = sadd.s32 %s188, 1
      %p192 = scmp.eq.s32.totalorder %s18, 1
      %p193 = scmp.ne.s32.totalorder %s188, %s190
      %p194 = scmp.eq.s32.totalorder %s18, 0
      %p195 = por %p193, %p194
      %p196 = scmp.ne.s32.totalorder %s188, %s190
      %p197 = scmp.eq.s32.totalorder %s23, 1
      %p198 = por %p196, %p197
      %p199 = scmp.ne.s32.totalorder %s190, %s191
      %p200 = scmp.eq.s32.totalorder %s23, 0
      %p201 = por %p199, %p200
      %p202 = scmp.ne.s32.totalorder %s190, %s191
      %p203 = scmp.eq.s32.totalorder %s24, 1
      %p204 = por %p202, %p203
      %p206 = scmp.ne.s32.totalorder %s191, %s205
      %p207 = scmp.eq.s32.totalorder %s24, 0
      %p208 = por %p206, %p207
      %s210 = sadd.s32 %s209, 1
      %p213 = scmp.eq.s32.totalorder %s18, 1
      %p214 = scmp.ne.s32.totalorder %s209, %s211
      %p215 = scmp.eq.s32.totalorder %s18, 0
      %p216 = por %p214, %p215
      %p217 = scmp.ne.s32.totalorder %s209, %s211
      %p218 = scmp.eq.s32.totalorder %s23, 1
      %p219 = por %p217, %p218
      %p220 = scmp.ne.s32.totalorder %s211, %s212
      %p221 = scmp.eq.s32.totalorder %s23, 0
      %p222 = por %p220, %p221
      %p223 = scmp.ne.s32.totalorder %s211, %s212
      %p224 = scmp.eq.s32.totalorder %s24, 1
      %p225 = por %p223, %p224
      %p227 = scmp.ne.s32.totalorder %s212, %s226
      %p228 = scmp.eq.s32.totalorder %s24, 0
      %p229 = por %p227, %p228
      %s230 = ssub.s32 %s18, %s25
      %p231 = scmp.eq.s32.totalorder %s230, 0
      %s233 = sadd.s32 %s232, 1
      %s234 = scalar_select %p231, %s232, %s233
      %p237 = pneg %p231
      %p238 = scmp.eq.s32.totalorder %s18, 1
      %p239 = por %p237, %p238
      %p240 = scmp.ne.s32.totalorder %s232, %s235
      %p241 = scmp.eq.s32.totalorder %s18, 0
      %p242 = por %p240, %p241
      %p243 = scmp.ne.s32.totalorder %s232, %s235
      %p244 = scmp.eq.s32.totalorder %s23, 1
      %p245 = por %p243, %p244
      %p246 = scmp.ne.s32.totalorder %s235, %s236
      %p247 = scmp.eq.s32.totalorder %s23, 0
      %p248 = por %p246, %p247
      %p249 = scmp.ne.s32.totalorder %s235, %s236
      %p250 = scmp.eq.s32.totalorder %s24, 1
      %p251 = por %p249, %p250
      %p253 = scmp.ne.s32.totalorder %s236, %s252
      %p254 = scmp.eq.s32.totalorder %s24, 0
      %p255 = por %p253, %p254
      %p256 = scmp.le.s32.totalorder 1, %s18
      %p257 = scmp.lt.s32.totalorder %s18, 3
      %p258 = pnand %p256, %p257
      %p259 = pneg %p258
      // Predicated region
      $region9: #{tpu_custom_call.1} parent=5 // pred_check
        _
      $region10: #{tpu_custom_call.1} parent=5 // pred_check_branch
        %261 = sbr.rel (%p258) target = $region12
      $region11: #{tpu_custom_call.1} parent=5 // pred_region
        %s262 = ssub.s32 %s18, 1
        // Predicated region
        $region13: #{tpu_custom_call.1} parent=11 // pred_check
          %p263 = pneg %p117
        $region14: #{tpu_custom_call.1} parent=11 // pred_check_branch
          %265 = sbr.rel (%p263) target = $region16
        $region15: #{tpu_custom_call.1} parent=11 // pred_region
          _
        $region16: #{tpu_custom_call.1} parent=11 // pred_fallthru
          _
        // Predicated region
        $region17: #{tpu_custom_call.1} parent=11 // pred_check
          %p266 = pneg %p138
        $region18: #{tpu_custom_call.1} parent=11 // pred_check_branch
          %268 = sbr.rel (%p266) target = $region20
        $region19: #{tpu_custom_call.1} parent=11 // pred_region
          _
        $region20: #{tpu_custom_call.1} parent=11 // pred_fallthru
          _
        // Predicated region
        $region21: #{tpu_custom_call.1} parent=11 // pred_check
          %p269 = pneg %p159
        $region22: #{tpu_custom_call.1} parent=11 // pred_check_branch
          %271 = sbr.rel (%p269) target = $region24
        $region23: #{tpu_custom_call.1} parent=11 // pred_region
          _
        $region24: #{tpu_custom_call.1} parent=11 // pred_fallthru
          _
        // Predicated region
        $region25: #{tpu_custom_call.1} parent=11 // pred_check
          %p272 = pneg %p180
        $region26: #{tpu_custom_call.1} parent=11 // pred_check_branch
          %274 = sbr.rel (%p272) target = $region28
        $region27: #{tpu_custom_call.1} parent=11 // pred_region
          _
        $region28: #{tpu_custom_call.1} parent=11 // pred_fallthru
          _
        // Predicated region
        $region29: #{tpu_custom_call.1} parent=11 // pred_check
          %p275 = pneg %p201
        $region30: #{tpu_custom_call.1} parent=11 // pred_check_branch
          %277 = sbr.rel (%p275) target = $region32
        $region31: #{tpu_custom_call.1} parent=11 // pred_region
          _
        $region32: #{tpu_custom_call.1} parent=11 // pred_fallthru
          _
        // Predicated region
        $region33: #{tpu_custom_call.1} parent=11 // pred_check
          %p278 = pneg %p222
        $region34: #{tpu_custom_call.1} parent=11 // pred_check_branch
          %280 = sbr.rel (%p278) target = $region36
        $region35: #{tpu_custom_call.1} parent=11 // pred_region
          _
        $region36: #{tpu_custom_call.1} parent=11 // pred_fallthru
          _
      $region12: #{tpu_custom_call.1} parent=5 // pred_fallthru
        _
      %p281 = scmp.lt.s32.totalorder %s18, 2
      // Predicated region
      $region37: #{tpu_custom_call.1} parent=5 // pred_check
        %p282 = pneg %p281
      $region38: #{tpu_custom_call.1} parent=5 // pred_check_branch
        %284 = sbr.rel (%p282) target = $region40
      $region39: #{tpu_custom_call.1} parent=5 // pred_region
        // Predicated region
        $region41: #{tpu_custom_call.1} parent=39 // pred_check
          %p285 = pneg %p38
        $region42: #{tpu_custom_call.1} parent=39 // pred_check_branch
          %287 = sbr.rel (%p285) target = $region44
        $region43: #{tpu_custom_call.1} parent=39 // pred_region
          %s288 = smul.u32 10, %s18
          %p289 = scmp.lt.s32.totalorder %s288, 19
          %s290 = scalar_select %p289, %s288, 19
          %s291 = smul.addr %s290, 8
          %s292 = scalar_lea.vmem %s0, %s291
          %s293 = smul.u32 10, %s18
        $region44: #{tpu_custom_call.1} parent=39 // pred_fallthru
          _
        // Predicated region
        $region45: #{tpu_custom_call.1} parent=39 // pred_check
          %p294 = pneg %p64
        $region46: #{tpu_custom_call.1} parent=39 // pred_check_branch
          %296 = sbr.rel (%p294) target = $region48
        $region47: #{tpu_custom_call.1} parent=39 // pred_region
          %p297 = scmp.lt.s32.totalorder %s18, 1
          %s298 = scalar_select %p297, %s18, 1
          %s299 = smul.addr %s298, 10
          %s300 = smul.addr %s299, 8
          %s301 = scalar_lea.vmem %s1, %s300
        $region48: #{tpu_custom_call.1} parent=39 // pred_fallthru
          _
        // Predicated region
        $region49: #{tpu_custom_call.1} parent=39 // pred_check
          %p302 = pneg %p90
        $region50: #{tpu_custom_call.1} parent=39 // pred_check_branch
          %304 = sbr.rel (%p302) target = $region52
        $region51: #{tpu_custom_call.1} parent=39 // pred_region
          %s305 = smul.u32 16, %s18
          %p306 = scmp.lt.s32.totalorder %s305, 31
          %s307 = scalar_select %p306, %s305, 31
          %s308 = smul.addr %s307, 8
          %s309 = scalar_lea.vmem %s2, %s308
          %s310 = smul.u32 16, %s18
        $region52: #{tpu_custom_call.1} parent=39 // pred_fallthru
          _
      $region40: #{tpu_custom_call.1} parent=5 // pred_fallthru
        _
      %p311 = scmp.le.s32.totalorder 1, %s18
      %p312 = scmp.lt.s32.totalorder %s18, 3
      %p313 = pnand %p311, %p312
      %p314 = pneg %p313
      // Predicated region
      $region53: #{tpu_custom_call.1} parent=5 // pred_check
        _
      $region54: #{tpu_custom_call.1} parent=5 // pred_check_branch
        %316 = sbr.rel (%p313) target = $region56
      $region55: #{tpu_custom_call.1} parent=5 // pred_region
        %s317 = ssub.s32 %s18, 1
        %s318 = smul.u32 10, %s23
        %p319 = scmp.lt.s32.totalorder %s318, 19
        %s320 = scalar_select %p319, %s318, 19
        %s321 = smul.addr %s320, 8
        %s322 = scalar_lea.vmem %s0, %s321
        %p323 = pneg %p44
        %p324 = pneg %p41
        %p325 = scmp.lt.s32.totalorder %s23, 1
        %s326 = scalar_select %p325, %s23, 1
        %s327 = smul.addr %s326, 10
        %s328 = smul.addr %s327, 8
        %s329 = scalar_lea.vmem %s1, %s328
        %p330 = pneg %p70
        %p331 = pneg %p67
        %s332 = smul.u32 16, %s23
        %p333 = scmp.lt.s32.totalorder %s332, 31
        %s334 = scalar_select %p333, %s332, 31
        %s335 = smul.addr %s334, 8
        %s336 = scalar_lea.vmem %s2, %s335
        %p337 = pneg %p96
        %p338 = pneg %p93
        %p339 = pneg %p117
        %p340 = pneg %p114
        %p341 = pneg %p138
        %p342 = pneg %p135
        %p343 = pneg %p159
        %p344 = pneg %p156
        %p345 = pneg %p180
        %p346 = pneg %p177
        %p347 = pneg %p201
        %p348 = pneg %p198
        %p349 = pneg %p222
        %p350 = pneg %p219
        %p351 = pneg %p248
        %p352 = pneg %p245
        %s353 = sand.u32 %s235, 1
        %s354 = scalar_lea.sflag [#allocation3], %s353
        %s355 = sand.u32 %s235, 1
        %s356 = smul.addr %s355, 16
        %s357 = scalar_lea.vmem [#allocation2], %s356
        %s358 = smul.u32 10, %s23
        %p359 = scmp.lt.s32.totalorder %s358, 19
        %s360 = scalar_select %p359, %s358, 19
        %s361 = smul.addr %s360, 8
        %s362 = scalar_lea.vmem %s0, %s361
        %s363 = smul.u32 10, %s23
        %p364 = scmp.lt.s32.totalorder %s23, 1
        %s365 = scalar_select %p364, %s23, 1
        %s366 = smul.addr %s365, 10
        %s367 = smul.addr %s366, 8
        %s368 = scalar_lea.vmem %s1, %s367
        %s369 = smul.u32 16, %s23
        %p370 = scmp.lt.s32.totalorder %s369, 31
        %s371 = scalar_select %p370, %s369, 31
        %s372 = smul.addr %s371, 8
        %s373 = scalar_lea.vmem %s2, %s372
        %s374 = smul.u32 16, %s23
        %s375 = smul.u32 2, %s23
        %v376 = vld [vmem:[%s7] sm:$0xff]
        %v377 = vld [vmem:[%s7 + $0x8] sm:$0xff]
        %v378 = vld [vmem:[%s7 + $0x10] sm:$0xff]
        %v379 = vld [vmem:[%s7 + $0x18] sm:$0xff]
        %v380 = vld [vmem:[%s7 + $0x20] sm:$0xff]
        %v381 = vld [vmem:[%s7 + $0x28] sm:$0xff]
        %v382 = vld [vmem:[%s7 + $0x30] sm:$0xff]
        %v383 = vld [vmem:[%s7 + $0x38] sm:$0xff]
        %v384 = vld [vmem:[%s7 + $0x40] sm:$0xff]
        %v385 = vld [vmem:[%s7 + $0x48] sm:$0xff]
        %v386 = vld [vmem:[%s8] sm:$0xff]
        %v387 = vld [vmem:[%s8 + $0x8] sm:$0xff]
        %v388 = vld [vmem:[%s362] sm:$0xff]
        %v389 = vld [vmem:[%s362 + $0x8] sm:$0xff]
        %v390 = vld [vmem:[%s362 + $0x10] sm:$0xff]
        %v391 = vld [vmem:[%s362 + $0x18] sm:$0xff]
        %v392 = vld [vmem:[%s362 + $0x20] sm:$0xff]
        %v393 = vld [vmem:[%s362 + $0x28] sm:$0xff]
        %v394 = vld [vmem:[%s362 + $0x30] sm:$0xff]
        %v395 = vld [vmem:[%s362 + $0x38] sm:$0xff]
        %v396 = vld [vmem:[%s362 + $0x40] sm:$0xff]
        %v397 = vld [vmem:[%s362 + $0x48] sm:$0xff]
        %v398 = vld [vmem:[%s368] sm:$0xff]
        %v399 = vld [vmem:[%s368 + $0x8] sm:$0xff]
        %v400 = vld [vmem:[%s368 + $0x10] sm:$0xff]
        %v401 = vld [vmem:[%s368 + $0x18] sm:$0xff]
        %v402 = vld [vmem:[%s368 + $0x20] sm:$0xff]
        %v403 = vld [vmem:[%s368 + $0x28] sm:$0xff]
        %v404 = vld [vmem:[%s368 + $0x30] sm:$0xff]
        %v405 = vld [vmem:[%s368 + $0x38] sm:$0xff]
        %v406 = vld [vmem:[%s368 + $0x40] sm:$0xff]
        %v407 = vld [vmem:[%s368 + $0x48] sm:$0xff]
        %vm408 = vcmask 64512
        %v410 = vsel %vm408, %v388, 0
        %v413 = vsel %vm408, %v389, 0
        %v416 = vsel %vm408, %v390, 0
        %v419 = vsel %vm408, %v391, 0
        %v422 = vsel %vm408, %v392, 0
        %v425 = vsel %vm408, %v393, 0
        %v428 = vsel %vm408, %v394, 0
        %v431 = vsel %vm408, %v395, 0
        %v434 = vsel %vm408, %v396, 0
        %v437 = vsel %vm408, %v397, 0
        %439 = vmatpush.msra.mxu0 0.0
        %440 = vmatpush.msra.mxu0 0.0
        %441 = vmatpush.msra.mxu0 0.0
        %442 = vmatpush.msra.mxu0 0.0
        %443 = vmatpush.msra.mxu0 0.0
        %444 = vmatpush.msra.mxu0 0.0
        %445 = vmatpush.msra.mxu0 0.0
        %446 = vmatpush.msra.mxu0 0.0
        %447 = vmatpush.msra.mxu0 0.0
        %448 = vmatpush.msra.mxu0 0.0
        %449 = vmatpush.msra.mxu0 0.0
        %450 = vmatpush.msra.mxu0 0.0
        %451 = vmatpush.msra.mxu0 0.0
        %452 = vmatpush.msra.mxu0 0.0
        %453 = vmatpush.msra.mxu0 0.0
        %454 = vmatpush.msra.mxu0 %v376
        %455 = vmatmul.f32.gmra.mxu0 %v410
        %v456 = vpop.f32.mrf.mxu0
        %v457 = vadd.f32 0.0, %v456
        %458 = vmatmul.f32.gmra.mxu0 %v413
        %v459 = vpop.f32.mrf.mxu0
        %v460 = vadd.f32 0.0, %v459
        %461 = vmatmul.f32.gmra.mxu0 %v416
        %v462 = vpop.f32.mrf.mxu0
        %v463 = vadd.f32 0.0, %v462
        %464 = vmatmul.f32.gmra.mxu0 %v419
        %v465 = vpop.f32.mrf.mxu0
        %v466 = vadd.f32 0.0, %v465
        %467 = vmatmul.f32.gmra.mxu0 %v422
        %v468 = vpop.f32.mrf.mxu0
        %v469 = vadd.f32 0.0, %v468
        %470 = vmatmul.f32.gmra.mxu0 %v425
        %v471 = vpop.f32.mrf.mxu0
        %v472 = vadd.f32 0.0, %v471
        %473 = vmatmul.f32.gmra.mxu0 %v428
        %v474 = vpop.f32.mrf.mxu0
        %v475 = vadd.f32 0.0, %v474
        %476 = vmatmul.f32.gmra.mxu0 %v431
        %v477 = vpop.f32.mrf.mxu0
        %v478 = vadd.f32 0.0, %v477
        %479 = vmatmul.f32.gmra.mxu0 %v434
        %v480 = vpop.f32.mrf.mxu0
        %v481 = vadd.f32 0.0, %v480
        %482 = vmatmul.f32.gmra.mxu0 %v437
        %v483 = vpop.f32.mrf.mxu0
        %v484 = vadd.f32 0.0, %v483
        %485 = vdwg.mxu0
        %496 = vrot.lane.b32.xlu0 %v457, 112
        %v497 = vpop.permute.xlu0 %496
        %498 = vrot.lane.b32.xlu0 %v460, 112
        %v499 = vpop.permute.xlu0 %498
        %500 = vrot.lane.b32.xlu0 %v463, 112
        %v501 = vpop.permute.xlu0 %500
        %502 = vrot.lane.b32.xlu0 %v466, 112
        %v503 = vpop.permute.xlu0 %502
        %504 = vrot.lane.b32.xlu0 %v469, 112
        %v505 = vpop.permute.xlu0 %504
        %506 = vrot.lane.b32.xlu0 %v472, 112
        %v507 = vpop.permute.xlu0 %506
        %508 = vrot.lane.b32.xlu0 %v475, 112
        %v509 = vpop.permute.xlu0 %508
        %510 = vrot.lane.b32.xlu0 %v478, 112
        %v511 = vpop.permute.xlu0 %510
        %512 = vrot.lane.b32.xlu0 %v481, 112
        %v513 = vpop.permute.xlu0 %512
        %514 = vrot.lane.b32.xlu0 %v484, 112
        %v515 = vpop.permute.xlu0 %514
        %vm526 = vcmask 654336
        %v528 = vsel %vm526, %v398, 0
        %v531 = vsel %vm526, %v399, 0
        %v534 = vsel %vm526, %v400, 0
        %v537 = vsel %vm526, %v401, 0
        %v540 = vsel %vm526, %v402, 0
        %v543 = vsel %vm526, %v403, 0
        %v546 = vsel %vm526, %v404, 0
        %v549 = vsel %vm526, %v405, 0
        %v552 = vsel %vm526, %v406, 0
        %v555 = vsel %vm526, %v407, 0
        %557 = vmatpush.msra.mxu0 0.0
        %558 = vmatpush.msra.mxu0 0.0
        %559 = vmatpush.msra.mxu0 0.0
        %560 = vmatpush.msra.mxu0 0.0
        %561 = vmatpush.msra.mxu0 0.0
        %562 = vmatpush.msra.mxu0 0.0
        %563 = vmatpush.msra.mxu0 %v515
        %564 = vmatpush.msra.mxu0 %v513
        %565 = vmatpush.msra.mxu0 %v511
        %566 = vmatpush.msra.mxu0 %v509
        %567 = vmatpush.msra.mxu0 %v507
        %568 = vmatpush.msra.mxu0 %v505
        %569 = vmatpush.msra.mxu0 %v503
        %570 = vmatpush.msra.mxu0 %v501
        %571 = vmatpush.msra.mxu0 %v499
        %572 = vmatpush.msra.mxu0 %v497
        %573 = vmatmul.f32.gmra.mxu0 %v528
        %v574 = vpop.f32.mrf.mxu0
        %v575 = vadd.f32 0.0, %v574
        %576 = vmatmul.f32.gmra.mxu0 %v531
        %v577 = vpop.f32.mrf.mxu0
        %v578 = vadd.f32 0.0, %v577
        %579 = vmatmul.f32.gmra.mxu0 %v534
        %v580 = vpop.f32.mrf.mxu0
        %v581 = vadd.f32 0.0, %v580
        %582 = vmatmul.f32.gmra.mxu0 %v537
        %v583 = vpop.f32.mrf.mxu0
        %v584 = vadd.f32 0.0, %v583
        %585 = vmatmul.f32.gmra.mxu0 %v540
        %v586 = vpop.f32.mrf.mxu0
        %v587 = vadd.f32 0.0, %v586
        %588 = vmatmul.f32.gmra.mxu0 %v543
        %v589 = vpop.f32.mrf.mxu0
        %v590 = vadd.f32 0.0, %v589
        %591 = vmatmul.f32.gmra.mxu0 %v546
        %v592 = vpop.f32.mrf.mxu0
        %v593 = vadd.f32 0.0, %v592
        %594 = vmatmul.f32.gmra.mxu0 %v549
        %v595 = vpop.f32.mrf.mxu0
        %v596 = vadd.f32 0.0, %v595
        %597 = vmatmul.f32.gmra.mxu0 %v552
        %v598 = vpop.f32.mrf.mxu0
        %v599 = vadd.f32 0.0, %v598
        %600 = vmatmul.f32.gmra.mxu0 %v555
        %v601 = vpop.f32.mrf.mxu0
        %v602 = vadd.f32 0.0, %v601
        %603 = vdwg.mxu0
        %v604 = vadd.f32 %v457, %v575
        %v605 = vadd.f32 %v460, %v578
        %v606 = vadd.f32 %v463, %v581
        %v607 = vadd.f32 %v466, %v584
        %v608 = vadd.f32 %v469, %v587
        %v609 = vadd.f32 %v472, %v590
        %v610 = vadd.f32 %v475, %v593
        %v611 = vadd.f32 %v478, %v596
        %v612 = vadd.f32 %v481, %v599
        %v613 = vadd.f32 %v484, %v602
        %v614 = vperm.slane %v386, 0
        %v615 = vadd.f32 %v604, %v614
        %v616 = vadd.f32 %v605, %v614
        %v617 = vadd.f32 %v606, %v614
        %v618 = vadd.f32 %v607, %v614
        %v619 = vadd.f32 %v608, %v614
        %v620 = vadd.f32 %v609, %v614
        %v621 = vadd.f32 %v610, %v614
        %v622 = vadd.f32 %v611, %v614
        %v623 = vadd.f32 %v612, %v614
        %v624 = vadd.f32 %v613, %v614
        %v625 = vmax.f32 %v615, 0.0
        %v626 = vmax.f32 %v616, 0.0
        %v627 = vmax.f32 %v617, 0.0
        %v628 = vmax.f32 %v618, 0.0
        %v629 = vmax.f32 %v619, 0.0
        %v630 = vmax.f32 %v620, 0.0
        %v631 = vmax.f32 %v621, 0.0
        %v632 = vmax.f32 %v622, 0.0
        %v633 = vmax.f32 %v623, 0.0
        %v634 = vmax.f32 %v624, 0.0
        %vm635 = vcmask 130048
        %v637 = vsel %vm635, %v625, 0
        %v640 = vsel %vm635, %v626, 0
        %v643 = vsel %vm635, %v627, 0
        %v646 = vsel %vm635, %v628, 0
        %v649 = vsel %vm635, %v629, 0
        %v652 = vsel %vm635, %v630, 0
        %v655 = vsel %vm635, %v631, 0
        %v658 = vsel %vm635, %v632, 0
        %v661 = vsel %vm635, %v633, 0
        %v664 = vsel %vm635, %v634, 0
        %666 = vmatpush.msra.mxu0 0.0
        %667 = vmatpush.msra.mxu0 0.0
        %668 = vmatpush.msra.mxu0 0.0
        %669 = vmatpush.msra.mxu0 0.0
        %670 = vmatpush.msra.mxu0 0.0
        %671 = vmatpush.msra.mxu0 0.0
        %672 = vmatpush.msra.mxu0 0.0
        %673 = vmatpush.msra.mxu0 0.0
        %674 = vmatpush.msra.mxu0 0.0
        %675 = vmatpush.msra.mxu0 0.0
        %676 = vmatpush.msra.mxu0 0.0
        %677 = vmatpush.msra.mxu0 0.0
        %678 = vmatpush.msra.mxu0 0.0
        %679 = vmatpush.msra.mxu0 0.0
        %680 = vmatpush.msra.mxu0 %v378
        %681 = vmatpush.msra.mxu0 %v377
        %682 = vmatmul.f32.gmra.mxu0 %v637
        %v683 = vpop.f32.mrf.mxu0
        %v684 = vadd.f32 0.0, %v683
        %685 = vmatmul.f32.gmra.mxu0 %v640
        %v686 = vpop.f32.mrf.mxu0
        %v687 = vadd.f32 0.0, %v686
        %688 = vmatmul.f32.gmra.mxu0 %v643
        %v689 = vpop.f32.mrf.mxu0
        %v690 = vadd.f32 0.0, %v689
        %691 = vmatmul.f32.gmra.mxu0 %v646
        %v692 = vpop.f32.mrf.mxu0
        %v693 = vadd.f32 0.0, %v692
        %694 = vmatmul.f32.gmra.mxu0 %v649
        %v695 = vpop.f32.mrf.mxu0
        %v696 = vadd.f32 0.0, %v695
        %697 = vmatmul.f32.gmra.mxu0 %v652
        %v698 = vpop.f32.mrf.mxu0
        %v699 = vadd.f32 0.0, %v698
        %700 = vmatmul.f32.gmra.mxu0 %v655
        %v701 = vpop.f32.mrf.mxu0
        %v702 = vadd.f32 0.0, %v701
        %703 = vmatmul.f32.gmra.mxu0 %v658
        %v704 = vpop.f32.mrf.mxu0
        %v705 = vadd.f32 0.0, %v704
        %706 = vmatmul.f32.gmra.mxu0 %v661
        %v707 = vpop.f32.mrf.mxu0
        %v708 = vadd.f32 0.0, %v707
        %709 = vmatmul.f32.gmra.mxu0 %v664
        %v710 = vpop.f32.mrf.mxu0
        %v711 = vadd.f32 0.0, %v710
        %712 = vdwg.mxu0
        %723 = vrot.lane.b32.xlu0 %v684, 112
        %v724 = vpop.permute.xlu0 %723
        %725 = vrot.lane.b32.xlu0 %v687, 112
        %v726 = vpop.permute.xlu0 %725
        %727 = vrot.lane.b32.xlu0 %v690, 112
        %v728 = vpop.permute.xlu0 %727
        %729 = vrot.lane.b32.xlu0 %v693, 112
        %v730 = vpop.permute.xlu0 %729
        %731 = vrot.lane.b32.xlu0 %v696, 112
        %v732 = vpop.permute.xlu0 %731
        %733 = vrot.lane.b32.xlu0 %v699, 112
        %v734 = vpop.permute.xlu0 %733
        %735 = vrot.lane.b32.xlu0 %v702, 112
        %v736 = vpop.permute.xlu0 %735
        %737 = vrot.lane.b32.xlu0 %v705, 112
        %v738 = vpop.permute.xlu0 %737
        %739 = vrot.lane.b32.xlu0 %v708, 112
        %v740 = vpop.permute.xlu0 %739
        %741 = vrot.lane.b32.xlu0 %v711, 112
        %v742 = vpop.permute.xlu0 %741
        %753 = vmatpush.msra.mxu0 0.0
        %754 = vmatpush.msra.mxu0 0.0
        %755 = vmatpush.msra.mxu0 0.0
        %756 = vmatpush.msra.mxu0 0.0
        %757 = vmatpush.msra.mxu0 0.0
        %758 = vmatpush.msra.mxu0 0.0
        %759 = vmatpush.msra.mxu0 %v742
        %760 = vmatpush.msra.mxu0 %v740
        %761 = vmatpush.msra.mxu0 %v738
        %762 = vmatpush.msra.mxu0 %v736
        %763 = vmatpush.msra.mxu0 %v734
        %764 = vmatpush.msra.mxu0 %v732
        %765 = vmatpush.msra.mxu0 %v730
        %766 = vmatpush.msra.mxu0 %v728
        %767 = vmatpush.msra.mxu0 %v726
        %768 = vmatpush.msra.mxu0 %v724
        %769 = vmatmul.f32.gmra.mxu0 %v528
        %v770 = vpop.f32.mrf.mxu0
        %v771 = vadd.f32 0.0, %v770
        %772 = vmatmul.f32.gmra.mxu0 %v531
        %v773 = vpop.f32.mrf.mxu0
        %v774 = vadd.f32 0.0, %v773
        %775 = vmatmul.f32.gmra.mxu0 %v534
        %v776 = vpop.f32.mrf.mxu0
        %v777 = vadd.f32 0.0, %v776
        %778 = vmatmul.f32.gmra.mxu0 %v537
        %v779 = vpop.f32.mrf.mxu0
        %v780 = vadd.f32 0.0, %v779
        %781 = vmatmul.f32.gmra.mxu0 %v540
        %v782 = vpop.f32.mrf.mxu0
        %v783 = vadd.f32 0.0, %v782
        %784 = vmatmul.f32.gmra.mxu0 %v543
        %v785 = vpop.f32.mrf.mxu0
        %v786 = vadd.f32 0.0, %v785
        %787 = vmatmul.f32.gmra.mxu0 %v546
        %v788 = vpop.f32.mrf.mxu0
        %v789 = vadd.f32 0.0, %v788
        %790 = vmatmul.f32.gmra.mxu0 %v549
        %v791 = vpop.f32.mrf.mxu0
        %v792 = vadd.f32 0.0, %v791
        %793 = vmatmul.f32.gmra.mxu0 %v552
        %v794 = vpop.f32.mrf.mxu0
        %v795 = vadd.f32 0.0, %v794
        %796 = vmatmul.f32.gmra.mxu0 %v555
        %v797 = vpop.f32.mrf.mxu0
        %v798 = vadd.f32 0.0, %v797
        %799 = vdwg.mxu0
        %v800 = vadd.f32 %v684, %v771
        %v801 = vadd.f32 %v687, %v774
        %v802 = vadd.f32 %v690, %v777
        %v803 = vadd.f32 %v693, %v780
        %v804 = vadd.f32 %v696, %v783
        %v805 = vadd.f32 %v699, %v786
        %v806 = vadd.f32 %v702, %v789
        %v807 = vadd.f32 %v705, %v792
        %v808 = vadd.f32 %v708, %v795
        %v809 = vadd.f32 %v711, %v798
        %v810 = vperm.slane %v386, 1
        %v811 = vadd.f32 %v800, %v810
        %v812 = vadd.f32 %v801, %v810
        %v813 = vadd.f32 %v802, %v810
        %v814 = vadd.f32 %v803, %v810
        %v815 = vadd.f32 %v804, %v810
        %v816 = vadd.f32 %v805, %v810
        %v817 = vadd.f32 %v806, %v810
        %v818 = vadd.f32 %v807, %v810
        %v819 = vadd.f32 %v808, %v810
        %v820 = vadd.f32 %v809, %v810
        %v821 = vmax.f32 %v811, 0.0
        %v822 = vmax.f32 %v812, 0.0
        %v823 = vmax.f32 %v813, 0.0
        %v824 = vmax.f32 %v814, 0.0
        %v825 = vmax.f32 %v815, 0.0
        %v826 = vmax.f32 %v816, 0.0
        %v827 = vmax.f32 %v817, 0.0
        %v828 = vmax.f32 %v818, 0.0
        %v829 = vmax.f32 %v819, 0.0
        %v830 = vmax.f32 %v820, 0.0
        %v831 = vld [vmem:[%s4] sm:$0xff]
        %v832 = vld [vmem:[%s4 + $0x8] sm:$0xff]
        %v834 = vsel %vm526, %v831, 0
        %v837 = vsel %vm526, %v832, 0
        %839 = vmatpush.msra.mxu0 0.0
        %840 = vmatpush.msra.mxu0 0.0
        %841 = vmatpush.msra.mxu0 0.0
        %842 = vmatpush.msra.mxu0 0.0
        %843 = vmatpush.msra.mxu0 0.0
        %844 = vmatpush.msra.mxu0 0.0
        %845 = vmatpush.msra.mxu0 %v830
        %846 = vmatpush.msra.mxu0 %v829
        %847 = vmatpush.msra.mxu0 %v828
        %848 = vmatpush.msra.mxu0 %v827
        %849 = vmatpush.msra.mxu0 %v826
        %850 = vmatpush.msra.mxu0 %v825
        %851 = vmatpush.msra.mxu0 %v824
        %852 = vmatpush.msra.mxu0 %v823
        %853 = vmatpush.msra.mxu0 %v822
        %854 = vmatpush.msra.mxu0 %v821
        %855 = vmatmul.f32.gmra.mxu0 %v834
        %v856 = vpop.f32.mrf.mxu0
        %v857 = vadd.f32 0.0, %v856
        %858 = vmatmul.f32.gmra.mxu0 %v837
        %v859 = vpop.f32.mrf.mxu0
        %v860 = vadd.f32 0.0, %v859
        %861 = vdwg.mxu0
        %v862 = vperm.slane %v386, 5
        %v863 = vmul.f32 %v857, %v862
        %v864 = vmul.f32 %v860, %v862
        %v865 = vsel %vm635, %v863, 0.0
        %866 = vadd.xlane.f32.xlu0 %v865
        %v867 = vpop.xlane.xlu0 %866
        %v868 = vsel %vm635, %v864, 0.0
        %869 = vadd.xlane.f32.xlu0 %v868
        %v870 = vpop.xlane.xlu0 %869
        %v871 = vperm.slane %v386, 7
        %v872 = vadd.f32 %v867, %v871
        %v873 = vadd.f32 %v870, %v871
        %v874 = vld [vmem:[%s373] sm:$0xff]
        %v875 = vld [vmem:[%s373 + $0x8] sm:$0xff]
        %v876 = vld [vmem:[%s373 + $0x10] sm:$0xff]
        %v877 = vld [vmem:[%s373 + $0x18] sm:$0xff]
        %v878 = vld [vmem:[%s373 + $0x20] sm:$0xff]
        %v879 = vld [vmem:[%s373 + $0x28] sm:$0xff]
        %v880 = vld [vmem:[%s373 + $0x30] sm:$0xff]
        %v881 = vld [vmem:[%s373 + $0x38] sm:$0xff]
        %v882 = vld [vmem:[%s373 + $0x40] sm:$0xff]
        %v883 = vld [vmem:[%s373 + $0x48] sm:$0xff]
        %v884 = vld [vmem:[%s373 + $0x50] sm:$0xff]
        %v885 = vld [vmem:[%s373 + $0x58] sm:$0xff]
        %v886 = vld [vmem:[%s373 + $0x60] sm:$0xff]
        %v887 = vld [vmem:[%s373 + $0x68] sm:$0xff]
        %v888 = vld [vmem:[%s373 + $0x70] sm:$0xff]
        %v889 = vld [vmem:[%s373 + $0x78] sm:$0xff]
        %v890 = vld [vmem:[%s3] sm:$0xff]
        %v891 = vld [vmem:[%s3 + $0x8] sm:$0xff]
        %v892 = vld [vmem:[%s3 + $0x10] sm:$0xff]
        %v893 = vld [vmem:[%s3 + $0x18] sm:$0xff]
        %v894 = vld [vmem:[%s3 + $0x20] sm:$0xff]
        %v895 = vld [vmem:[%s3 + $0x28] sm:$0xff]
        %v896 = vld [vmem:[%s3 + $0x30] sm:$0xff]
        %v897 = vld [vmem:[%s3 + $0x38] sm:$0xff]
        %v898 = vld [vmem:[%s3 + $0x40] sm:$0xff]
        %v899 = vld [vmem:[%s3 + $0x48] sm:$0xff]
        %v900 = vld [vmem:[%s3 + $0x50] sm:$0xff]
        %v901 = vld [vmem:[%s3 + $0x58] sm:$0xff]
        %v902 = vld [vmem:[%s3 + $0x60] sm:$0xff]
        %v903 = vld [vmem:[%s3 + $0x68] sm:$0xff]
        %v904 = vld [vmem:[%s3 + $0x70] sm:$0xff]
        %v905 = vld [vmem:[%s3 + $0x78] sm:$0xff]
        %s906 = scalar_lea.vmem %s3, 128
        %v907 = vld [vmem:[%s906] sm:$0xff]
        %v908 = vld [vmem:[%s906 + $0x8] sm:$0xff]
        %v909 = vld [vmem:[%s906 + $0x10] sm:$0xff]
        %v910 = vld [vmem:[%s906 + $0x18] sm:$0xff]
        %v911 = vld [vmem:[%s906 + $0x20] sm:$0xff]
        %v912 = vld [vmem:[%s906 + $0x28] sm:$0xff]
        %v913 = vld [vmem:[%s906 + $0x30] sm:$0xff]
        %v914 = vld [vmem:[%s906 + $0x38] sm:$0xff]
        %v915 = vld [vmem:[%s906 + $0x40] sm:$0xff]
        %v916 = vld [vmem:[%s906 + $0x48] sm:$0xff]
        %v917 = vld [vmem:[%s906 + $0x50] sm:$0xff]
        %v918 = vld [vmem:[%s906 + $0x58] sm:$0xff]
        %v919 = vld [vmem:[%s906 + $0x60] sm:$0xff]
        %v920 = vld [vmem:[%s906 + $0x68] sm:$0xff]
        %v921 = vld [vmem:[%s906 + $0x70] sm:$0xff]
        %v922 = vld [vmem:[%s906 + $0x78] sm:$0xff]
        %v923 = vld [vmem:[%s5] sm:$0xff]
        %v924 = vld [vmem:[%s5 + $0x8] sm:$0xff]
        %v925 = vld [vmem:[%s6] sm:$0xff]
        %v926 = vld [vmem:[%s6 + $0x8] sm:$0xff]
        %v927 = vld [vmem:[%s6 + $0x10] sm:$0xff]
        %v928 = vld [vmem:[%s6 + $0x18] sm:$0xff]
        %v929 = vld [vmem:[%s6 + $0x20] sm:$0xff]
        %v930 = vld [vmem:[%s6 + $0x28] sm:$0xff]
        %v931 = vld [vmem:[%s6 + $0x30] sm:$0xff]
        %v932 = vld [vmem:[%s6 + $0x38] sm:$0xff]
        %v933 = vld [vmem:[%s6 + $0x40] sm:$0xff]
        %v934 = vld [vmem:[%s6 + $0x48] sm:$0xff]
        %v935 = vld [vmem:[%s6 + $0x50] sm:$0xff]
        %v936 = vld [vmem:[%s6 + $0x58] sm:$0xff]
        %v937 = vld [vmem:[%s6 + $0x60] sm:$0xff]
        %v938 = vld [vmem:[%s6 + $0x68] sm:$0xff]
        %v939 = vld [vmem:[%s6 + $0x70] sm:$0xff]
        %v940 = vld [vmem:[%s6 + $0x78] sm:$0xff]
        %v941 = vlaneseq
        %v942 = vshrl.u32 %v941, 7
        %v943 = vadd.s32 %v942, 8
        %v944 = vadd.s32 %v942, 16
        %v945 = vadd.s32 %v942, 24
        %v946 = vadd.s32 %v942, 32
        %v947 = vadd.s32 %v942, 40
        %v948 = vadd.s32 %v942, 48
        %v949 = vadd.s32 %v942, 56
        %v950 = vadd.s32 %v942, 64
        %v951 = vadd.s32 %v942, 72
        %v952 = vadd.s32 %v942, 80
        %v953 = vadd.s32 %v942, 88
        %v954 = vadd.s32 %v942, 96
        %v955 = vadd.s32 %v942, 104
        %v956 = vadd.s32 %v942, 112
        %v957 = vadd.s32 %v942, 120
        %vm958 = vcmp.ge.s32.totalorder %v942, 16
        %vm959 = vcmp.ge.s32.totalorder %v943, 16
        %vm960 = vcmp.ge.s32.totalorder %v944, 16
        %vm961 = vcmp.ge.s32.totalorder %v945, 16
        %vm962 = vcmp.ge.s32.totalorder %v946, 16
        %vm963 = vcmp.ge.s32.totalorder %v947, 16
        %vm964 = vcmp.ge.s32.totalorder %v948, 16
        %vm965 = vcmp.ge.s32.totalorder %v949, 16
        %vm966 = vcmp.ge.s32.totalorder %v950, 16
        %vm967 = vcmp.ge.s32.totalorder %v951, 16
        %vm968 = vcmp.ge.s32.totalorder %v952, 16
        %vm969 = vcmp.ge.s32.totalorder %v953, 16
        %vm970 = vcmp.ge.s32.totalorder %v954, 16
        %vm971 = vcmp.ge.s32.totalorder %v955, 16
        %vm972 = vcmp.ge.s32.totalorder %v956, 16
        %vm973 = vcmp.ge.s32.totalorder %v957, 16
        %v974 = vsel %vm958, 1, 0
        %v975 = vsel %vm959, 1, 0
        %v976 = vsel %vm960, 1, 0
        %v977 = vsel %vm961, 1, 0
        %v978 = vsel %vm962, 1, 0
        %v979 = vsel %vm963, 1, 0
        %v980 = vsel %vm964, 1, 0
        %v981 = vsel %vm965, 1, 0
        %v982 = vsel %vm966, 1, 0
        %v983 = vsel %vm967, 1, 0
        %v984 = vsel %vm968, 1, 0
        %v985 = vsel %vm969, 1, 0
        %v986 = vsel %vm970, 1, 0
        %v987 = vsel %vm971, 1, 0
        %v988 = vsel %vm972, 1, 0
        %v989 = vsel %vm973, 1, 0
        %v990 = vcvt.s32.f32 %v974
        %v991 = vcvt.s32.f32 %v975
        %v992 = vcvt.s32.f32 %v976
        %v993 = vcvt.s32.f32 %v977
        %v994 = vcvt.s32.f32 %v978
        %v995 = vcvt.s32.f32 %v979
        %v996 = vcvt.s32.f32 %v980
        %v997 = vcvt.s32.f32 %v981
        %v998 = vcvt.s32.f32 %v982
        %v999 = vcvt.s32.f32 %v983
        %v1000 = vcvt.s32.f32 %v984
        %v1001 = vcvt.s32.f32 %v985
        %v1002 = vcvt.s32.f32 %v986
        %v1003 = vcvt.s32.f32 %v987
        %v1004 = vcvt.s32.f32 %v988
        %v1005 = vcvt.s32.f32 %v989
        %v1007 = vsel %vm408, %v874, 0
        %v1010 = vsel %vm408, %v875, 0
        %v1013 = vsel %vm408, %v876, 0
        %v1016 = vsel %vm408, %v877, 0
        %v1019 = vsel %vm408, %v878, 0
        %v1022 = vsel %vm408, %v879, 0
        %v1025 = vsel %vm408, %v880, 0
        %v1028 = vsel %vm408, %v881, 0
        %v1031 = vsel %vm408, %v882, 0
        %v1034 = vsel %vm408, %v883, 0
        %v1037 = vsel %vm408, %v884, 0
        %v1040 = vsel %vm408, %v885, 0
        %v1043 = vsel %vm408, %v886, 0
        %v1046 = vsel %vm408, %v887, 0
        %v1049 = vsel %vm408, %v888, 0
        %v1052 = vsel %vm408, %v889, 0
        %1054 = vmatpush.msra.mxu0 0.0
        %1055 = vmatpush.msra.mxu0 0.0
        %1056 = vmatpush.msra.mxu0 0.0
        %1057 = vmatpush.msra.mxu0 0.0
        %1058 = vmatpush.msra.mxu0 0.0
        %1059 = vmatpush.msra.mxu0 0.0
        %1060 = vmatpush.msra.mxu0 0.0
        %1061 = vmatpush.msra.mxu0 0.0
        %1062 = vmatpush.msra.mxu0 0.0
        %1063 = vmatpush.msra.mxu0 0.0
        %1064 = vmatpush.msra.mxu0 0.0
        %1065 = vmatpush.msra.mxu0 0.0
        %1066 = vmatpush.msra.mxu0 0.0
        %1067 = vmatpush.msra.mxu0 0.0
        %1068 = vmatpush.msra.mxu0 0.0
        %1069 = vmatpush.msra.mxu0 %v379
        %1070 = vmatmul.f32.gmra.mxu0 %v1007
        %v1071 = vpop.f32.mrf.mxu0
        %v1072 = vadd.f32 0.0, %v1071
        %1073 = vmatmul.f32.gmra.mxu0 %v1010
        %v1074 = vpop.f32.mrf.mxu0
        %v1075 = vadd.f32 0.0, %v1074
        %1076 = vmatmul.f32.gmra.mxu0 %v1013
        %v1077 = vpop.f32.mrf.mxu0
        %v1078 = vadd.f32 0.0, %v1077
        %1079 = vmatmul.f32.gmra.mxu0 %v1016
        %v1080 = vpop.f32.mrf.mxu0
        %v1081 = vadd.f32 0.0, %v1080
        %1082 = vmatmul.f32.gmra.mxu0 %v1019
        %v1083 = vpop.f32.mrf.mxu0
        %v1084 = vadd.f32 0.0, %v1083
        %1085 = vmatmul.f32.gmra.mxu0 %v1022
        %v1086 = vpop.f32.mrf.mxu0
        %v1087 = vadd.f32 0.0, %v1086
        %1088 = vmatmul.f32.gmra.mxu0 %v1025
        %v1089 = vpop.f32.mrf.mxu0
        %v1090 = vadd.f32 0.0, %v1089
        %1091 = vmatmul.f32.gmra.mxu0 %v1028
        %v1092 = vpop.f32.mrf.mxu0
        %v1093 = vadd.f32 0.0, %v1092
        %1094 = vmatmul.f32.gmra.mxu0 %v1031
        %v1095 = vpop.f32.mrf.mxu0
        %v1096 = vadd.f32 0.0, %v1095
        %1097 = vmatmul.f32.gmra.mxu0 %v1034
        %v1098 = vpop.f32.mrf.mxu0
        %v1099 = vadd.f32 0.0, %v1098
        %1100 = vmatmul.f32.gmra.mxu0 %v1037
        %v1101 = vpop.f32.mrf.mxu0
        %v1102 = vadd.f32 0.0, %v1101
        %1103 = vmatmul.f32.gmra.mxu0 %v1040
        %v1104 = vpop.f32.mrf.mxu0
        %v1105 = vadd.f32 0.0, %v1104
        %1106 = vmatmul.f32.gmra.mxu0 %v1043
        %v1107 = vpop.f32.mrf.mxu0
        %v1108 = vadd.f32 0.0, %v1107
        %1109 = vmatmul.f32.gmra.mxu0 %v1046
        %v1110 = vpop.f32.mrf.mxu0
        %v1111 = vadd.f32 0.0, %v1110
        %1112 = vmatmul.f32.gmra.mxu0 %v1049
        %v1113 = vpop.f32.mrf.mxu0
        %v1114 = vadd.f32 0.0, %v1113
        %1115 = vmatmul.f32.gmra.mxu0 %v1052
        %v1116 = vpop.f32.mrf.mxu0
        %v1117 = vadd.f32 0.0, %v1116
        %1118 = vdwg.mxu0
        %1135 = vrot.lane.b32.xlu0 %v1072, 96
        %v1136 = vpop.permute.xlu0 %1135
        %1137 = vrot.lane.b32.xlu0 %v1075, 96
        %v1138 = vpop.permute.xlu0 %1137
        %1139 = vrot.lane.b32.xlu0 %v1078, 96
        %v1140 = vpop.permute.xlu0 %1139
        %1141 = vrot.lane.b32.xlu0 %v1081, 96
        %v1142 = vpop.permute.xlu0 %1141
        %1143 = vrot.lane.b32.xlu0 %v1084, 96
        %v1144 = vpop.permute.xlu0 %1143
        %1145 = vrot.lane.b32.xlu0 %v1087, 96
        %v1146 = vpop.permute.xlu0 %1145
        %1147 = vrot.lane.b32.xlu0 %v1090, 96
        %v1148 = vpop.permute.xlu0 %1147
        %1149 = vrot.lane.b32.xlu0 %v1093, 96
        %v1150 = vpop.permute.xlu0 %1149
        %1151 = vrot.lane.b32.xlu0 %v1096, 96
        %v1152 = vpop.permute.xlu0 %1151
        %1153 = vrot.lane.b32.xlu0 %v1099, 96
        %v1154 = vpop.permute.xlu0 %1153
        %1155 = vrot.lane.b32.xlu0 %v1102, 96
        %v1156 = vpop.permute.xlu0 %1155
        %1157 = vrot.lane.b32.xlu0 %v1105, 96
        %v1158 = vpop.permute.xlu0 %1157
        %1159 = vrot.lane.b32.xlu0 %v1108, 96
        %v1160 = vpop.permute.xlu0 %1159
        %1161 = vrot.lane.b32.xlu0 %v1111, 96
        %v1162 = vpop.permute.xlu0 %1161
        %1163 = vrot.lane.b32.xlu0 %v1114, 96
        %v1164 = vpop.permute.xlu0 %1163
        %1165 = vrot.lane.b32.xlu0 %v1117, 96
        %v1166 = vpop.permute.xlu0 %1165
        %1183 = vmatpush.msra.mxu0 %v1166
        %1184 = vmatpush.msra.mxu0 %v1164
        %1185 = vmatpush.msra.mxu0 %v1162
        %1186 = vmatpush.msra.mxu0 %v1160
        %1187 = vmatpush.msra.mxu0 %v1158
        %1188 = vmatpush.msra.mxu0 %v1156
        %1189 = vmatpush.msra.mxu0 %v1154
        %1190 = vmatpush.msra.mxu0 %v1152
        %1191 = vmatpush.msra.mxu0 %v1150
        %1192 = vmatpush.msra.mxu0 %v1148
        %1193 = vmatpush.msra.mxu0 %v1146
        %1194 = vmatpush.msra.mxu0 %v1144
        %1195 = vmatpush.msra.mxu0 %v1142
        %1196 = vmatpush.msra.mxu0 %v1140
        %1197 = vmatpush.msra.mxu0 %v1138
        %1198 = vmatpush.msra.mxu0 %v1136
        %1199 = vmatmul.f32.gmra.mxu0 %v890
        %v1200 = vpop.f32.mrf.mxu0
        %v1201 = vadd.f32 0.0, %v1200
        %1202 = vmatmul.f32.gmra.mxu0 %v891
        %v1203 = vpop.f32.mrf.mxu0
        %v1204 = vadd.f32 0.0, %v1203
        %1205 = vmatmul.f32.gmra.mxu0 %v892
        %v1206 = vpop.f32.mrf.mxu0
        %v1207 = vadd.f32 0.0, %v1206
        %1208 = vmatmul.f32.gmra.mxu0 %v893
        %v1209 = vpop.f32.mrf.mxu0
        %v1210 = vadd.f32 0.0, %v1209
        %1211 = vmatmul.f32.gmra.mxu0 %v894
        %v1212 = vpop.f32.mrf.mxu0
        %v1213 = vadd.f32 0.0, %v1212
        %1214 = vmatmul.f32.gmra.mxu0 %v895
        %v1215 = vpop.f32.mrf.mxu0
        %v1216 = vadd.f32 0.0, %v1215
        %1217 = vmatmul.f32.gmra.mxu0 %v896
        %v1218 = vpop.f32.mrf.mxu0
        %v1219 = vadd.f32 0.0, %v1218
        %1220 = vmatmul.f32.gmra.mxu0 %v897
        %v1221 = vpop.f32.mrf.mxu0
        %v1222 = vadd.f32 0.0, %v1221
        %1223 = vmatmul.f32.gmra.mxu0 %v898
        %v1224 = vpop.f32.mrf.mxu0
        %v1225 = vadd.f32 0.0, %v1224
        %1226 = vmatmul.f32.gmra.mxu0 %v899
        %v1227 = vpop.f32.mrf.mxu0
        %v1228 = vadd.f32 0.0, %v1227
        %1229 = vmatmul.f32.gmra.mxu0 %v900
        %v1230 = vpop.f32.mrf.mxu0
        %v1231 = vadd.f32 0.0, %v1230
        %1232 = vmatmul.f32.gmra.mxu0 %v901
        %v1233 = vpop.f32.mrf.mxu0
        %v1234 = vadd.f32 0.0, %v1233
        %1235 = vmatmul.f32.gmra.mxu0 %v902
        %v1236 = vpop.f32.mrf.mxu0
        %v1237 = vadd.f32 0.0, %v1236
        %1238 = vmatmul.f32.gmra.mxu0 %v903
        %v1239 = vpop.f32.mrf.mxu0
        %v1240 = vadd.f32 0.0, %v1239
        %1241 = vmatmul.f32.gmra.mxu0 %v904
        %v1242 = vpop.f32.mrf.mxu0
        %v1243 = vadd.f32 0.0, %v1242
        %1244 = vmatmul.f32.gmra.mxu0 %v905
        %v1245 = vpop.f32.mrf.mxu0
        %v1246 = vadd.f32 0.0, %v1245
        %1247 = vdwg.mxu0
        %1248 = vrot.lane.b32.xlu0 %v1072, 64
        %v1249 = vpop.permute.xlu0 %1248
        %1250 = vrot.lane.b32.xlu0 %v1075, 64
        %v1251 = vpop.permute.xlu0 %1250
        %1252 = vrot.lane.b32.xlu0 %v1078, 64
        %v1253 = vpop.permute.xlu0 %1252
        %1254 = vrot.lane.b32.xlu0 %v1081, 64
        %v1255 = vpop.permute.xlu0 %1254
        %1256 = vrot.lane.b32.xlu0 %v1084, 64
        %v1257 = vpop.permute.xlu0 %1256
        %1258 = vrot.lane.b32.xlu0 %v1087, 64
        %v1259 = vpop.permute.xlu0 %1258
        %1260 = vrot.lane.b32.xlu0 %v1090, 64
        %v1261 = vpop.permute.xlu0 %1260
        %1262 = vrot.lane.b32.xlu0 %v1093, 64
        %v1263 = vpop.permute.xlu0 %1262
        %1264 = vrot.lane.b32.xlu0 %v1096, 64
        %v1265 = vpop.permute.xlu0 %1264
        %1266 = vrot.lane.b32.xlu0 %v1099, 64
        %v1267 = vpop.permute.xlu0 %1266
        %1268 = vrot.lane.b32.xlu0 %v1102, 64
        %v1269 = vpop.permute.xlu0 %1268
        %1270 = vrot.lane.b32.xlu0 %v1105, 64
        %v1271 = vpop.permute.xlu0 %1270
        %1272 = vrot.lane.b32.xlu0 %v1108, 64
        %v1273 = vpop.permute.xlu0 %1272
        %1274 = vrot.lane.b32.xlu0 %v1111, 64
        %v1275 = vpop.permute.xlu0 %1274
        %1276 = vrot.lane.b32.xlu0 %v1114, 64
        %v1277 = vpop.permute.xlu0 %1276
        %1278 = vrot.lane.b32.xlu0 %v1117, 64
        %v1279 = vpop.permute.xlu0 %1278
        %1296 = vmatpush.msra.mxu0 %v1279
        %1297 = vmatpush.msra.mxu0 %v1277
        %1298 = vmatpush.msra.mxu0 %v1275
        %1299 = vmatpush.msra.mxu0 %v1273
        %1300 = vmatpush.msra.mxu0 %v1271
        %1301 = vmatpush.msra.mxu0 %v1269
        %1302 = vmatpush.msra.mxu0 %v1267
        %1303 = vmatpush.msra.mxu0 %v1265
        %1304 = vmatpush.msra.mxu0 %v1263
        %1305 = vmatpush.msra.mxu0 %v1261
        %1306 = vmatpush.msra.mxu0 %v1259
        %1307 = vmatpush.msra.mxu0 %v1257
        %1308 = vmatpush.msra.mxu0 %v1255
        %1309 = vmatpush.msra.mxu0 %v1253
        %1310 = vmatpush.msra.mxu0 %v1251
        %1311 = vmatpush.msra.mxu0 %v1249
        %1312 = vmatmul.f32.gmra.mxu0 %v907
        %v1313 = vpop.f32.mrf.mxu0
        %v1314 = vadd.f32 0.0, %v1313
        %1315 = vmatmul.f32.gmra.mxu0 %v908
        %v1316 = vpop.f32.mrf.mxu0
        %v1317 = vadd.f32 0.0, %v1316
        %1318 = vmatmul.f32.gmra.mxu0 %v909
        %v1319 = vpop.f32.mrf.mxu0
        %v1320 = vadd.f32 0.0, %v1319
        %1321 = vmatmul.f32.gmra.mxu0 %v910
        %v1322 = vpop.f32.mrf.mxu0
        %v1323 = vadd.f32 0.0, %v1322
        %1324 = vmatmul.f32.gmra.mxu0 %v911
        %v1325 = vpop.f32.mrf.mxu0
        %v1326 = vadd.f32 0.0, %v1325
        %1327 = vmatmul.f32.gmra.mxu0 %v912
        %v1328 = vpop.f32.mrf.mxu0
        %v1329 = vadd.f32 0.0, %v1328
        %1330 = vmatmul.f32.gmra.mxu0 %v913
        %v1331 = vpop.f32.mrf.mxu0
        %v1332 = vadd.f32 0.0, %v1331
        %1333 = vmatmul.f32.gmra.mxu0 %v914
        %v1334 = vpop.f32.mrf.mxu0
        %v1335 = vadd.f32 0.0, %v1334
        %1336 = vmatmul.f32.gmra.mxu0 %v915
        %v1337 = vpop.f32.mrf.mxu0
        %v1338 = vadd.f32 0.0, %v1337
        %1339 = vmatmul.f32.gmra.mxu0 %v916
        %v1340 = vpop.f32.mrf.mxu0
        %v1341 = vadd.f32 0.0, %v1340
        %1342 = vmatmul.f32.gmra.mxu0 %v917
        %v1343 = vpop.f32.mrf.mxu0
        %v1344 = vadd.f32 0.0, %v1343
        %1345 = vmatmul.f32.gmra.mxu0 %v918
        %v1346 = vpop.f32.mrf.mxu0
        %v1347 = vadd.f32 0.0, %v1346
        %1348 = vmatmul.f32.gmra.mxu0 %v919
        %v1349 = vpop.f32.mrf.mxu0
        %v1350 = vadd.f32 0.0, %v1349
        %1351 = vmatmul.f32.gmra.mxu0 %v920
        %v1352 = vpop.f32.mrf.mxu0
        %v1353 = vadd.f32 0.0, %v1352
        %1354 = vmatmul.f32.gmra.mxu0 %v921
        %v1355 = vpop.f32.mrf.mxu0
        %v1356 = vadd.f32 0.0, %v1355
        %1357 = vmatmul.f32.gmra.mxu0 %v922
        %v1358 = vpop.f32.mrf.mxu0
        %v1359 = vadd.f32 0.0, %v1358
        %1360 = vdwg.mxu0
        %v1361 = vperm.slane %v386, 2
        %v1362 = vadd.f32 %v1072, %v1361
        %v1363 = vadd.f32 %v1075, %v1361
        %v1364 = vadd.f32 %v1078, %v1361
        %v1365 = vadd.f32 %v1081, %v1361
        %v1366 = vadd.f32 %v1084, %v1361
        %v1367 = vadd.f32 %v1087, %v1361
        %v1368 = vadd.f32 %v1090, %v1361
        %v1369 = vadd.f32 %v1093, %v1361
        %v1370 = vadd.f32 %v1096, %v1361
        %v1371 = vadd.f32 %v1099, %v1361
        %v1372 = vadd.f32 %v1102, %v1361
        %v1373 = vadd.f32 %v1105, %v1361
        %v1374 = vadd.f32 %v1108, %v1361
        %v1375 = vadd.f32 %v1111, %v1361
        %v1376 = vadd.f32 %v1114, %v1361
        %v1377 = vadd.f32 %v1117, %v1361
        %v1378 = vmul.f32 %v990, %v1362
        %v1379 = vmul.f32 %v991, %v1363
        %v1380 = vmul.f32 %v992, %v1364
        %v1381 = vmul.f32 %v993, %v1365
        %v1382 = vmul.f32 %v994, %v1366
        %v1383 = vmul.f32 %v995, %v1367
        %v1384 = vmul.f32 %v996, %v1368
        %v1385 = vmul.f32 %v997, %v1369
        %v1386 = vmul.f32 %v998, %v1370
        %v1387 = vmul.f32 %v999, %v1371
        %v1388 = vmul.f32 %v1000, %v1372
        %v1389 = vmul.f32 %v1001, %v1373
        %v1390 = vmul.f32 %v1002, %v1374
        %v1391 = vmul.f32 %v1003, %v1375
        %v1392 = vmul.f32 %v1004, %v1376
        %v1393 = vmul.f32 %v1005, %v1377
        %v1394 = vadd.f32 %v1378, %v1201
        %v1395 = vadd.f32 %v1379, %v1204
        %v1396 = vadd.f32 %v1380, %v1207
        %v1397 = vadd.f32 %v1381, %v1210
        %v1398 = vadd.f32 %v1382, %v1213
        %v1399 = vadd.f32 %v1383, %v1216
        %v1400 = vadd.f32 %v1384, %v1219
        %v1401 = vadd.f32 %v1385, %v1222
        %v1402 = vadd.f32 %v1386, %v1225
        %v1403 = vadd.f32 %v1387, %v1228
        %v1404 = vadd.f32 %v1388, %v1231
        %v1405 = vadd.f32 %v1389, %v1234
        %v1406 = vadd.f32 %v1390, %v1237
        %v1407 = vadd.f32 %v1391, %v1240
        %v1408 = vadd.f32 %v1392, %v1243
        %v1409 = vadd.f32 %v1393, %v1246
        %v1410 = vadd.f32 %v1394, %v1314
        %v1411 = vadd.f32 %v1395, %v1317
        %v1412 = vadd.f32 %v1396, %v1320
        %v1413 = vadd.f32 %v1397, %v1323
        %v1414 = vadd.f32 %v1398, %v1326
        %v1415 = vadd.f32 %v1399, %v1329
        %v1416 = vadd.f32 %v1400, %v1332
        %v1417 = vadd.f32 %v1401, %v1335
        %v1418 = vadd.f32 %v1402, %v1338
        %v1419 = vadd.f32 %v1403, %v1341
        %v1420 = vadd.f32 %v1404, %v1344
        %v1421 = vadd.f32 %v1405, %v1347
        %v1422 = vadd.f32 %v1406, %v1350
        %v1423 = vadd.f32 %v1407, %v1353
        %v1424 = vadd.f32 %v1408, %v1356
        %v1425 = vadd.f32 %v1409, %v1359
        %1426 = vmatpush.msra.mxu0 %v1425
        %1427 = vmatpush.msra.mxu0 %v1424
        %1428 = vmatpush.msra.mxu0 %v1423
        %1429 = vmatpush.msra.mxu0 %v1422
        %1430 = vmatpush.msra.mxu0 %v1421
        %1431 = vmatpush.msra.mxu0 %v1420
        %1432 = vmatpush.msra.mxu0 %v1419
        %1433 = vmatpush.msra.mxu0 %v1418
        %1434 = vmatpush.msra.mxu0 %v1417
        %1435 = vmatpush.msra.mxu0 %v1416
        %1436 = vmatpush.msra.mxu0 %v1415
        %1437 = vmatpush.msra.mxu0 %v1414
        %1438 = vmatpush.msra.mxu0 %v1413
        %1439 = vmatpush.msra.mxu0 %v1412
        %1440 = vmatpush.msra.mxu0 %v1411
        %1441 = vmatpush.msra.mxu0 %v1410
        %1442 = vmatmul.f32.gmra.mxu0 %v923
        %v1443 = vpop.f32.mrf.mxu0
        %v1444 = vadd.f32 0.0, %v1443
        %1445 = vmatmul.f32.gmra.mxu0 %v924
        %v1446 = vpop.f32.mrf.mxu0
        %v1447 = vadd.f32 0.0, %v1446
        %1448 = vdwg.mxu0
        %vm1449 = vcmask 261120
        %v1450 = vsel %vm1449, %v1444, 0.0
        %1451 = vadd.xlane.f32.xlu0 %v1450
        %v1452 = vpop.xlane.xlu0 %1451
        %v1453 = vsel %vm1449, %v1447, 0.0
        %1454 = vadd.xlane.f32.xlu0 %v1453
        %v1455 = vpop.xlane.xlu0 %1454
        %v1456 = vmul.f32 %v1452, 0.00390625
        %v1457 = vmul.f32 %v1455, 0.00390625
        %v1459 = vsel %vm635, %v925, 0
        %v1462 = vsel %vm635, %v926, 0
        %v1465 = vsel %vm635, %v927, 0
        %v1468 = vsel %vm635, %v928, 0
        %v1471 = vsel %vm635, %v929, 0
        %v1474 = vsel %vm635, %v930, 0
        %v1477 = vsel %vm635, %v931, 0
        %v1480 = vsel %vm635, %v932, 0
        %v1483 = vsel %vm635, %v933, 0
        %v1486 = vsel %vm635, %v934, 0
        %v1489 = vsel %vm635, %v935, 0
        %v1492 = vsel %vm635, %v936, 0
        %v1495 = vsel %vm635, %v937, 0
        %v1498 = vsel %vm635, %v938, 0
        %v1501 = vsel %vm635, %v939, 0
        %v1504 = vsel %vm635, %v940, 0
        %1506 = vmatpush.msra.mxu0 0.0
        %1507 = vmatpush.msra.mxu0 0.0
        %1508 = vmatpush.msra.mxu0 0.0
        %1509 = vmatpush.msra.mxu0 0.0
        %1510 = vmatpush.msra.mxu0 0.0
        %1511 = vmatpush.msra.mxu0 0.0
        %1512 = vmatpush.msra.mxu0 0.0
        %1513 = vmatpush.msra.mxu0 0.0
        %1514 = vmatpush.msra.mxu0 0.0
        %1515 = vmatpush.msra.mxu0 0.0
        %1516 = vmatpush.msra.mxu0 0.0
        %1517 = vmatpush.msra.mxu0 0.0
        %1518 = vmatpush.msra.mxu0 0.0
        %1519 = vmatpush.msra.mxu0 0.0
        %1520 = vmatpush.msra.mxu0 %v1457
        %1521 = vmatpush.msra.mxu0 %v1456
        %1522 = vmatmul.f32.gmra.mxu0 %v1459
        %v1523 = vpop.f32.mrf.mxu0
        %v1524 = vadd.f32 0.0, %v1523
        %1525 = vmatmul.f32.gmra.mxu0 %v1462
        %v1526 = vpop.f32.mrf.mxu0
        %v1527 = vadd.f32 0.0, %v1526
        %1528 = vmatmul.f32.gmra.mxu0 %v1465
        %v1529 = vpop.f32.mrf.mxu0
        %v1530 = vadd.f32 0.0, %v1529
        %1531 = vmatmul.f32.gmra.mxu0 %v1468
        %v1532 = vpop.f32.mrf.mxu0
        %v1533 = vadd.f32 0.0, %v1532
        %1534 = vmatmul.f32.gmra.mxu0 %v1471
        %v1535 = vpop.f32.mrf.mxu0
        %v1536 = vadd.f32 0.0, %v1535
        %1537 = vmatmul.f32.gmra.mxu0 %v1474
        %v1538 = vpop.f32.mrf.mxu0
        %v1539 = vadd.f32 0.0, %v1538
        %1540 = vmatmul.f32.gmra.mxu0 %v1477
        %v1541 = vpop.f32.mrf.mxu0
        %v1542 = vadd.f32 0.0, %v1541
        %1543 = vmatmul.f32.gmra.mxu0 %v1480
        %v1544 = vpop.f32.mrf.mxu0
        %v1545 = vadd.f32 0.0, %v1544
        %1546 = vmatmul.f32.gmra.mxu0 %v1483
        %v1547 = vpop.f32.mrf.mxu0
        %v1548 = vadd.f32 0.0, %v1547
        %1549 = vmatmul.f32.gmra.mxu0 %v1486
        %v1550 = vpop.f32.mrf.mxu0
        %v1551 = vadd.f32 0.0, %v1550
        %1552 = vmatmul.f32.gmra.mxu0 %v1489
        %v1553 = vpop.f32.mrf.mxu0
        %v1554 = vadd.f32 0.0, %v1553
        %1555 = vmatmul.f32.gmra.mxu0 %v1492
        %v1556 = vpop.f32.mrf.mxu0
        %v1557 = vadd.f32 0.0, %v1556
        %1558 = vmatmul.f32.gmra.mxu0 %v1495
        %v1559 = vpop.f32.mrf.mxu0
        %v1560 = vadd.f32 0.0, %v1559
        %1561 = vmatmul.f32.gmra.mxu0 %v1498
        %v1562 = vpop.f32.mrf.mxu0
        %v1563 = vadd.f32 0.0, %v1562
        %1564 = vmatmul.f32.gmra.mxu0 %v1501
        %v1565 = vpop.f32.mrf.mxu0
        %v1566 = vadd.f32 0.0, %v1565
        %1567 = vmatmul.f32.gmra.mxu0 %v1504
        %v1568 = vpop.f32.mrf.mxu0
        %v1569 = vadd.f32 0.0, %v1568
        %1570 = vdwg.mxu0
        %1572 = vset.pattern.permute.xlu0 0
        %1573 = vperm.xlu0 %1572, %v1524
        %v1574 = vpop.permute.xlu0 %1573
        %1577 = vset.pattern.permute.xlu0 0
        %1578 = vperm.xlu0 %1577, %v1527
        %v1579 = vpop.permute.xlu0 %1578
        %1582 = vset.pattern.permute.xlu0 0
        %1583 = vperm.xlu0 %1582, %v1530
        %v1584 = vpop.permute.xlu0 %1583
        %1587 = vset.pattern.permute.xlu0 0
        %1588 = vperm.xlu0 %1587, %v1533
        %v1589 = vpop.permute.xlu0 %1588
        %1592 = vset.pattern.permute.xlu0 0
        %1593 = vperm.xlu0 %1592, %v1536
        %v1594 = vpop.permute.xlu0 %1593
        %1597 = vset.pattern.permute.xlu0 0
        %1598 = vperm.xlu0 %1597, %v1539
        %v1599 = vpop.permute.xlu0 %1598
        %1602 = vset.pattern.permute.xlu0 0
        %1603 = vperm.xlu0 %1602, %v1542
        %v1604 = vpop.permute.xlu0 %1603
        %1607 = vset.pattern.permute.xlu0 0
        %1608 = vperm.xlu0 %1607, %v1545
        %v1609 = vpop.permute.xlu0 %1608
        %1612 = vset.pattern.permute.xlu0 0
        %1613 = vperm.xlu0 %1612, %v1548
        %v1614 = vpop.permute.xlu0 %1613
        %1617 = vset.pattern.permute.xlu0 0
        %1618 = vperm.xlu0 %1617, %v1551
        %v1619 = vpop.permute.xlu0 %1618
        %1622 = vset.pattern.permute.xlu0 0
        %1623 = vperm.xlu0 %1622, %v1554
        %v1624 = vpop.permute.xlu0 %1623
        %1627 = vset.pattern.permute.xlu0 0
        %1628 = vperm.xlu0 %1627, %v1557
        %v1629 = vpop.permute.xlu0 %1628
        %1632 = vset.pattern.permute.xlu0 0
        %1633 = vperm.xlu0 %1632, %v1560
        %v1634 = vpop.permute.xlu0 %1633
        %1637 = vset.pattern.permute.xlu0 0
        %1638 = vperm.xlu0 %1637, %v1563
        %v1639 = vpop.permute.xlu0 %1638
        %1642 = vset.pattern.permute.xlu0 0
        %1643 = vperm.xlu0 %1642, %v1566
        %v1644 = vpop.permute.xlu0 %1643
        %1647 = vset.pattern.permute.xlu0 0
        %1648 = vperm.xlu0 %1647, %v1569
        %v1649 = vpop.permute.xlu0 %1648
        %v1651 = vsub.f32 %v1410, %v1574
        %v1652 = vsub.f32 %v1411, %v1579
        %v1653 = vsub.f32 %v1412, %v1584
        %v1654 = vsub.f32 %v1413, %v1589
        %v1655 = vsub.f32 %v1414, %v1594
        %v1656 = vsub.f32 %v1415, %v1599
        %v1657 = vsub.f32 %v1416, %v1604
        %v1658 = vsub.f32 %v1417, %v1609
        %v1659 = vsub.f32 %v1418, %v1614
        %v1660 = vsub.f32 %v1419, %v1619
        %v1661 = vsub.f32 %v1420, %v1624
        %v1662 = vsub.f32 %v1421, %v1629
        %v1663 = vsub.f32 %v1422, %v1634
        %v1664 = vsub.f32 %v1423, %v1639
        %v1665 = vsub.f32 %v1424, %v1644
        %v1666 = vsub.f32 %v1425, %v1649
        %v1667 = vmul.f32 %v1651, %v1651
        %v1668 = vmul.f32 %v1652, %v1652
        %v1669 = vmul.f32 %v1653, %v1653
        %v1670 = vmul.f32 %v1654, %v1654
        %v1671 = vmul.f32 %v1655, %v1655
        %v1672 = vmul.f32 %v1656, %v1656
        %v1673 = vmul.f32 %v1657, %v1657
        %v1674 = vmul.f32 %v1658, %v1658
        %v1675 = vmul.f32 %v1659, %v1659
        %v1676 = vmul.f32 %v1660, %v1660
        %v1677 = vmul.f32 %v1661, %v1661
        %v1678 = vmul.f32 %v1662, %v1662
        %v1679 = vmul.f32 %v1663, %v1663
        %v1680 = vmul.f32 %v1664, %v1664
        %v1681 = vmul.f32 %v1665, %v1665
        %v1682 = vmul.f32 %v1666, %v1666
        %1683 = vmatpush.msra.mxu0 %v1682
        %1684 = vmatpush.msra.mxu0 %v1681
        %1685 = vmatpush.msra.mxu0 %v1680
        %1686 = vmatpush.msra.mxu0 %v1679
        %1687 = vmatpush.msra.mxu0 %v1678
        %1688 = vmatpush.msra.mxu0 %v1677
        %1689 = vmatpush.msra.mxu0 %v1676
        %1690 = vmatpush.msra.mxu0 %v1675
        %1691 = vmatpush.msra.mxu0 %v1674
        %1692 = vmatpush.msra.mxu0 %v1673
        %1693 = vmatpush.msra.mxu0 %v1672
        %1694 = vmatpush.msra.mxu0 %v1671
        %1695 = vmatpush.msra.mxu0 %v1670
        %1696 = vmatpush.msra.mxu0 %v1669
        %1697 = vmatpush.msra.mxu0 %v1668
        %1698 = vmatpush.msra.mxu0 %v1667
        %1699 = vmatmul.f32.gmra.mxu0 %v923
        %v1700 = vpop.f32.mrf.mxu0
        %v1701 = vadd.f32 0.0, %v1700
        %1702 = vmatmul.f32.gmra.mxu0 %v924
        %v1703 = vpop.f32.mrf.mxu0
        %v1704 = vadd.f32 0.0, %v1703
        %1705 = vdwg.mxu0
        %v1706 = vsel %vm1449, %v1701, 0.0
        %1707 = vadd.xlane.f32.xlu0 %v1706
        %v1708 = vpop.xlane.xlu0 %1707
        %v1709 = vsel %vm1449, %v1704, 0.0
        %1710 = vadd.xlane.f32.xlu0 %v1709
        %v1711 = vpop.xlane.xlu0 %1710
        %v1712 = vmul.f32 %v1708, 0.003921569
        %v1713 = vmul.f32 %v1711, 0.003921569
        %v1714 = vrsqrt.pop %v1712
        %v1715 = vmul.f32 %v1714, %v1712
        %v1716 = vmul.f32 %v1715, %v1714
        %v1717 = vmul.f32 0.5, %v1716
        %v1718 = vsub.f32 1.5, %v1717
        %v1719 = vmul.f32 %v1714, %v1718
        %v1720 = vmul.f32 %v1712, %v1719
        %vm1721 = vcmp.eq.f32.partialorder %v1712, inf
        %v1722 = vsel %vm1721, %v1712, %v1720
        %vm1723 = vcmp.eq.f32.partialorder %v1712, 0.0
        %v1724 = vand.u32 %v1712, 2147483648
        %v1725 = vsel %vm1723, %v1724, %v1722
        %v1726 = vrsqrt.pop %v1713
        %v1727 = vmul.f32 %v1726, %v1713
        %v1728 = vmul.f32 %v1727, %v1726
        %v1729 = vmul.f32 0.5, %v1728
        %v1730 = vsub.f32 1.5, %v1729
        %v1731 = vmul.f32 %v1726, %v1730
        %v1732 = vmul.f32 %v1713, %v1731
        %vm1733 = vcmp.eq.f32.partialorder %v1713, inf
        %v1734 = vsel %vm1733, %v1713, %v1732
        %vm1735 = vcmp.eq.f32.partialorder %v1713, 0.0
        %v1736 = vand.u32 %v1713, 2147483648
        %v1737 = vsel %vm1735, %v1736, %v1734
        %v1738 = vadd.f32 %v1725, 1e-05
        %v1739 = vadd.f32 %v1737, 1e-05
        %v1740 = vrcp.pop %v1738
        %v1741 = vmul.f32 %v1738, %v1740
        %v1742 = vsub.f32 1.0, %v1741
        %v1743 = vmul.f32 %v1740, %v1742
        %v1744 = vadd.f32 %v1740, %v1743
        %vm1745 = vweird.f32 %v1738
        %vm1746 = vweird.f32 %v1740
        %vm1747 = vmor %vm1745, %vm1746
        %v1748 = vsel %vm1747, %v1740, %v1744
        %v1749 = vand.u32 2147483647, %v1738
        %vm1750 = vcmp.eq.f32.partialorder %v1749, 8.507059e+37
        %v1751 = vand.u32 %v1738, 2147483648
        %v1752 = vor.u32 1.1754944e-38, %v1751
        %v1753 = vsel %vm1750, %v1752, %v1748
        %v1754 = vrcp.pop %v1739
        %v1755 = vmul.f32 %v1739, %v1754
        %v1756 = vsub.f32 1.0, %v1755
        %v1757 = vmul.f32 %v1754, %v1756
        %v1758 = vadd.f32 %v1754, %v1757
        %vm1759 = vweird.f32 %v1739
        %vm1760 = vweird.f32 %v1754
        %vm1761 = vmor %vm1759, %vm1760
        %v1762 = vsel %vm1761, %v1754, %v1758
        %v1763 = vand.u32 2147483647, %v1739
        %vm1764 = vcmp.eq.f32.partialorder %v1763, 8.507059e+37
        %v1765 = vand.u32 %v1739, 2147483648
        %v1766 = vor.u32 1.1754944e-38, %v1765
        %v1767 = vsel %vm1764, %v1766, %v1762
        %1768 = vmatpush.msra.mxu0 0.0
        %1769 = vmatpush.msra.mxu0 0.0
        %1770 = vmatpush.msra.mxu0 0.0
        %1771 = vmatpush.msra.mxu0 0.0
        %1772 = vmatpush.msra.mxu0 0.0
        %1773 = vmatpush.msra.mxu0 0.0
        %1774 = vmatpush.msra.mxu0 0.0
        %1775 = vmatpush.msra.mxu0 0.0
        %1776 = vmatpush.msra.mxu0 0.0
        %1777 = vmatpush.msra.mxu0 0.0
        %1778 = vmatpush.msra.mxu0 0.0
        %1779 = vmatpush.msra.mxu0 0.0
        %1780 = vmatpush.msra.mxu0 0.0
        %1781 = vmatpush.msra.mxu0 0.0
        %1782 = vmatpush.msra.mxu0 %v1767
        %1783 = vmatpush.msra.mxu0 %v1753
        %1784 = vmatmul.f32.gmra.mxu0 %v1459
        %v1785 = vpop.f32.mrf.mxu0
        %v1786 = vadd.f32 0.0, %v1785
        %1787 = vmatmul.f32.gmra.mxu0 %v1462
        %v1788 = vpop.f32.mrf.mxu0
        %v1789 = vadd.f32 0.0, %v1788
        %1790 = vmatmul.f32.gmra.mxu0 %v1465
        %v1791 = vpop.f32.mrf.mxu0
        %v1792 = vadd.f32 0.0, %v1791
        %1793 = vmatmul.f32.gmra.mxu0 %v1468
        %v1794 = vpop.f32.mrf.mxu0
        %v1795 = vadd.f32 0.0, %v1794
        %1796 = vmatmul.f32.gmra.mxu0 %v1471
        %v1797 = vpop.f32.mrf.mxu0
        %v1798 = vadd.f32 0.0, %v1797
        %1799 = vmatmul.f32.gmra.mxu0 %v1474
        %v1800 = vpop.f32.mrf.mxu0
        %v1801 = vadd.f32 0.0, %v1800
        %1802 = vmatmul.f32.gmra.mxu0 %v1477
        %v1803 = vpop.f32.mrf.mxu0
        %v1804 = vadd.f32 0.0, %v1803
        %1805 = vmatmul.f32.gmra.mxu0 %v1480
        %v1806 = vpop.f32.mrf.mxu0
        %v1807 = vadd.f32 0.0, %v1806
        %1808 = vmatmul.f32.gmra.mxu0 %v1483
        %v1809 = vpop.f32.mrf.mxu0
        %v1810 = vadd.f32 0.0, %v1809
        %1811 = vmatmul.f32.gmra.mxu0 %v1486
        %v1812 = vpop.f32.mrf.mxu0
        %v1813 = vadd.f32 0.0, %v1812
        %1814 = vmatmul.f32.gmra.mxu0 %v1489
        %v1815 = vpop.f32.mrf.mxu0
        %v1816 = vadd.f32 0.0, %v1815
        %1817 = vmatmul.f32.gmra.mxu0 %v1492
        %v1818 = vpop.f32.mrf.mxu0
        %v1819 = vadd.f32 0.0, %v1818
        %1820 = vmatmul.f32.gmra.mxu0 %v1495
        %v1821 = vpop.f32.mrf.mxu0
        %v1822 = vadd.f32 0.0, %v1821
        %1823 = vmatmul.f32.gmra.mxu0 %v1498
        %v1824 = vpop.f32.mrf.mxu0
        %v1825 = vadd.f32 0.0, %v1824
        %1826 = vmatmul.f32.gmra.mxu0 %v1501
        %v1827 = vpop.f32.mrf.mxu0
        %v1828 = vadd.f32 0.0, %v1827
        %1829 = vmatmul.f32.gmra.mxu0 %v1504
        %v1830 = vpop.f32.mrf.mxu0
        %v1831 = vadd.f32 0.0, %v1830
        %1832 = vdwg.mxu0
        %1834 = vset.pattern.permute.xlu0 0
        %1835 = vperm.xlu0 %1834, %v1786
        %v1836 = vpop.permute.xlu0 %1835
        %1839 = vset.pattern.permute.xlu0 0
        %1840 = vperm.xlu0 %1839, %v1789
        %v1841 = vpop.permute.xlu0 %1840
        %1844 = vset.pattern.permute.xlu0 0
        %1845 = vperm.xlu0 %1844, %v1792
        %v1846 = vpop.permute.xlu0 %1845
        %1849 = vset.pattern.permute.xlu0 0
        %1850 = vperm.xlu0 %1849, %v1795
        %v1851 = vpop.permute.xlu0 %1850
        %1854 = vset.pattern.permute.xlu0 0
        %1855 = vperm.xlu0 %1854, %v1798
        %v1856 = vpop.permute.xlu0 %1855
        %1859 = vset.pattern.permute.xlu0 0
        %1860 = vperm.xlu0 %1859, %v1801
        %v1861 = vpop.permute.xlu0 %1860
        %1864 = vset.pattern.permute.xlu0 0
        %1865 = vperm.xlu0 %1864, %v1804
        %v1866 = vpop.permute.xlu0 %1865
        %1869 = vset.pattern.permute.xlu0 0
        %1870 = vperm.xlu0 %1869, %v1807
        %v1871 = vpop.permute.xlu0 %1870
        %1874 = vset.pattern.permute.xlu0 0
        %1875 = vperm.xlu0 %1874, %v1810
        %v1876 = vpop.permute.xlu0 %1875
        %1879 = vset.pattern.permute.xlu0 0
        %1880 = vperm.xlu0 %1879, %v1813
        %v1881 = vpop.permute.xlu0 %1880
        %1884 = vset.pattern.permute.xlu0 0
        %1885 = vperm.xlu0 %1884, %v1816
        %v1886 = vpop.permute.xlu0 %1885
        %1889 = vset.pattern.permute.xlu0 0
        %1890 = vperm.xlu0 %1889, %v1819
        %v1891 = vpop.permute.xlu0 %1890
        %1894 = vset.pattern.permute.xlu0 0
        %1895 = vperm.xlu0 %1894, %v1822
        %v1896 = vpop.permute.xlu0 %1895
        %1899 = vset.pattern.permute.xlu0 0
        %1900 = vperm.xlu0 %1899, %v1825
        %v1901 = vpop.permute.xlu0 %1900
        %1904 = vset.pattern.permute.xlu0 0
        %1905 = vperm.xlu0 %1904, %v1828
        %v1906 = vpop.permute.xlu0 %1905
        %1909 = vset.pattern.permute.xlu0 0
        %1910 = vperm.xlu0 %1909, %v1831
        %v1911 = vpop.permute.xlu0 %1910
        %v1913 = vmul.f32 %v1651, %v1836
        %v1914 = vmul.f32 %v1652, %v1841
        %v1915 = vmul.f32 %v1653, %v1846
        %v1916 = vmul.f32 %v1654, %v1851
        %v1917 = vmul.f32 %v1655, %v1856
        %v1918 = vmul.f32 %v1656, %v1861
        %v1919 = vmul.f32 %v1657, %v1866
        %v1920 = vmul.f32 %v1658, %v1871
        %v1921 = vmul.f32 %v1659, %v1876
        %v1922 = vmul.f32 %v1660, %v1881
        %v1923 = vmul.f32 %v1661, %v1886
        %v1924 = vmul.f32 %v1662, %v1891
        %v1925 = vmul.f32 %v1663, %v1896
        %v1926 = vmul.f32 %v1664, %v1901
        %v1927 = vmul.f32 %v1665, %v1906
        %v1928 = vmul.f32 %v1666, %v1911
        %vm1929 = vcmp.gt.f32.partialorder %v1913, 0.0
        %vm1930 = vcmp.gt.f32.partialorder %v1914, 0.0
        %vm1931 = vcmp.gt.f32.partialorder %v1915, 0.0
        %vm1932 = vcmp.gt.f32.partialorder %v1916, 0.0
        %vm1933 = vcmp.gt.f32.partialorder %v1917, 0.0
        %vm1934 = vcmp.gt.f32.partialorder %v1918, 0.0
        %vm1935 = vcmp.gt.f32.partialorder %v1919, 0.0
        %vm1936 = vcmp.gt.f32.partialorder %v1920, 0.0
        %vm1937 = vcmp.gt.f32.partialorder %v1921, 0.0
        %vm1938 = vcmp.gt.f32.partialorder %v1922, 0.0
        %vm1939 = vcmp.gt.f32.partialorder %v1923, 0.0
        %vm1940 = vcmp.gt.f32.partialorder %v1924, 0.0
        %vm1941 = vcmp.gt.f32.partialorder %v1925, 0.0
        %vm1942 = vcmp.gt.f32.partialorder %v1926, 0.0
        %vm1943 = vcmp.gt.f32.partialorder %v1927, 0.0
        %vm1944 = vcmp.gt.f32.partialorder %v1928, 0.0
        %v1945 = vmul.f32 %v1913, 0.01
        %v1946 = vmul.f32 %v1914, 0.01
        %v1947 = vmul.f32 %v1915, 0.01
        %v1948 = vmul.f32 %v1916, 0.01
        %v1949 = vmul.f32 %v1917, 0.01
        %v1950 = vmul.f32 %v1918, 0.01
        %v1951 = vmul.f32 %v1919, 0.01
        %v1952 = vmul.f32 %v1920, 0.01
        %v1953 = vmul.f32 %v1921, 0.01
        %v1954 = vmul.f32 %v1922, 0.01
        %v1955 = vmul.f32 %v1923, 0.01
        %v1956 = vmul.f32 %v1924, 0.01
        %v1957 = vmul.f32 %v1925, 0.01
        %v1958 = vmul.f32 %v1926, 0.01
        %v1959 = vmul.f32 %v1927, 0.01
        %v1960 = vmul.f32 %v1928, 0.01
        %v1961 = vsel %vm1929, %v1913, %v1945
        %v1962 = vsel %vm1930, %v1914, %v1946
        %v1963 = vsel %vm1931, %v1915, %v1947
        %v1964 = vsel %vm1932, %v1916, %v1948
        %v1965 = vsel %vm1933, %v1917, %v1949
        %v1966 = vsel %vm1934, %v1918, %v1950
        %v1967 = vsel %vm1935, %v1919, %v1951
        %v1968 = vsel %vm1936, %v1920, %v1952
        %v1969 = vsel %vm1937, %v1921, %v1953
        %v1970 = vsel %vm1938, %v1922, %v1954
        %v1971 = vsel %vm1939, %v1923, %v1955
        %v1972 = vsel %vm1940, %v1924, %v1956
        %v1973 = vsel %vm1941, %v1925, %v1957
        %v1974 = vsel %vm1942, %v1926, %v1958
        %v1975 = vsel %vm1943, %v1927, %v1959
        %v1976 = vsel %vm1944, %v1928, %v1960
        %v1978 = vsel %vm1449, %v1961, 0
        %v1981 = vsel %vm1449, %v1962, 0
        %v1984 = vsel %vm1449, %v1963, 0
        %v1987 = vsel %vm1449, %v1964, 0
        %v1990 = vsel %vm1449, %v1965, 0
        %v1993 = vsel %vm1449, %v1966, 0
        %v1996 = vsel %vm1449, %v1967, 0
        %v1999 = vsel %vm1449, %v1968, 0
        %v2002 = vsel %vm1449, %v1969, 0
        %v2005 = vsel %vm1449, %v1970, 0
        %v2008 = vsel %vm1449, %v1971, 0
        %v2011 = vsel %vm1449, %v1972, 0
        %v2014 = vsel %vm1449, %v1973, 0
        %v2017 = vsel %vm1449, %v1974, 0
        %v2020 = vsel %vm1449, %v1975, 0
        %v2023 = vsel %vm1449, %v1976, 0
        %2025 = vmatpush.msra.mxu0 0.0
        %2026 = vmatpush.msra.mxu0 0.0
        %2027 = vmatpush.msra.mxu0 0.0
        %2028 = vmatpush.msra.mxu0 0.0
        %2029 = vmatpush.msra.mxu0 0.0
        %2030 = vmatpush.msra.mxu0 0.0
        %2031 = vmatpush.msra.mxu0 0.0
        %2032 = vmatpush.msra.mxu0 0.0
        %2033 = vmatpush.msra.mxu0 0.0
        %2034 = vmatpush.msra.mxu0 0.0
        %2035 = vmatpush.msra.mxu0 0.0
        %2036 = vmatpush.msra.mxu0 0.0
        %2037 = vmatpush.msra.mxu0 %v383
        %2038 = vmatpush.msra.mxu0 %v382
        %2039 = vmatpush.msra.mxu0 %v381
        %2040 = vmatpush.msra.mxu0 %v380
        %2041 = vmatmul.f32.gmra.mxu0 %v1978
        %v2042 = vpop.f32.mrf.mxu0
        %v2043 = vadd.f32 0.0, %v2042
        %2044 = vmatmul.f32.gmra.mxu0 %v1981
        %v2045 = vpop.f32.mrf.mxu0
        %v2046 = vadd.f32 0.0, %v2045
        %2047 = vmatmul.f32.gmra.mxu0 %v1984
        %v2048 = vpop.f32.mrf.mxu0
        %v2049 = vadd.f32 0.0, %v2048
        %2050 = vmatmul.f32.gmra.mxu0 %v1987
        %v2051 = vpop.f32.mrf.mxu0
        %v2052 = vadd.f32 0.0, %v2051
        %2053 = vmatmul.f32.gmra.mxu0 %v1990
        %v2054 = vpop.f32.mrf.mxu0
        %v2055 = vadd.f32 0.0, %v2054
        %2056 = vmatmul.f32.gmra.mxu0 %v1993
        %v2057 = vpop.f32.mrf.mxu0
        %v2058 = vadd.f32 0.0, %v2057
        %2059 = vmatmul.f32.gmra.mxu0 %v1996
        %v2060 = vpop.f32.mrf.mxu0
        %v2061 = vadd.f32 0.0, %v2060
        %2062 = vmatmul.f32.gmra.mxu0 %v1999
        %v2063 = vpop.f32.mrf.mxu0
        %v2064 = vadd.f32 0.0, %v2063
        %2065 = vmatmul.f32.gmra.mxu0 %v2002
        %v2066 = vpop.f32.mrf.mxu0
        %v2067 = vadd.f32 0.0, %v2066
        %2068 = vmatmul.f32.gmra.mxu0 %v2005
        %v2069 = vpop.f32.mrf.mxu0
        %v2070 = vadd.f32 0.0, %v2069
        %2071 = vmatmul.f32.gmra.mxu0 %v2008
        %v2072 = vpop.f32.mrf.mxu0
        %v2073 = vadd.f32 0.0, %v2072
        %2074 = vmatmul.f32.gmra.mxu0 %v2011
        %v2075 = vpop.f32.mrf.mxu0
        %v2076 = vadd.f32 0.0, %v2075
        %2077 = vmatmul.f32.gmra.mxu0 %v2014
        %v2078 = vpop.f32.mrf.mxu0
        %v2079 = vadd.f32 0.0, %v2078
        %2080 = vmatmul.f32.gmra.mxu0 %v2017
        %v2081 = vpop.f32.mrf.mxu0
        %v2082 = vadd.f32 0.0, %v2081
        %2083 = vmatmul.f32.gmra.mxu0 %v2020
        %v2084 = vpop.f32.mrf.mxu0
        %v2085 = vadd.f32 0.0, %v2084
        %2086 = vmatmul.f32.gmra.mxu0 %v2023
        %v2087 = vpop.f32.mrf.mxu0
        %v2088 = vadd.f32 0.0, %v2087
        %2089 = vdwg.mxu0
        %2106 = vrot.lane.b32.xlu0 %v2043, 112
        %v2107 = vpop.permute.xlu0 %2106
        %2108 = vrot.lane.b32.xlu0 %v2046, 112
        %v2109 = vpop.permute.xlu0 %2108
        %2110 = vrot.lane.b32.xlu0 %v2049, 112
        %v2111 = vpop.permute.xlu0 %2110
        %2112 = vrot.lane.b32.xlu0 %v2052, 112
        %v2113 = vpop.permute.xlu0 %2112
        %2114 = vrot.lane.b32.xlu0 %v2055, 112
        %v2115 = vpop.permute.xlu0 %2114
        %2116 = vrot.lane.b32.xlu0 %v2058, 112
        %v2117 = vpop.permute.xlu0 %2116
        %2118 = vrot.lane.b32.xlu0 %v2061, 112
        %v2119 = vpop.permute.xlu0 %2118
        %2120 = vrot.lane.b32.xlu0 %v2064, 112
        %v2121 = vpop.permute.xlu0 %2120
        %2122 = vrot.lane.b32.xlu0 %v2067, 112
        %v2123 = vpop.permute.xlu0 %2122
        %2124 = vrot.lane.b32.xlu0 %v2070, 112
        %v2125 = vpop.permute.xlu0 %2124
        %2126 = vrot.lane.b32.xlu0 %v2073, 112
        %v2127 = vpop.permute.xlu0 %2126
        %2128 = vrot.lane.b32.xlu0 %v2076, 112
        %v2129 = vpop.permute.xlu0 %2128
        %2130 = vrot.lane.b32.xlu0 %v2079, 112
        %v2131 = vpop.permute.xlu0 %2130
        %2132 = vrot.lane.b32.xlu0 %v2082, 112
        %v2133 = vpop.permute.xlu0 %2132
        %2134 = vrot.lane.b32.xlu0 %v2085, 112
        %v2135 = vpop.permute.xlu0 %2134
        %2136 = vrot.lane.b32.xlu0 %v2088, 112
        %v2137 = vpop.permute.xlu0 %2136
        %2154 = vmatpush.msra.mxu0 %v2137
        %2155 = vmatpush.msra.mxu0 %v2135
        %2156 = vmatpush.msra.mxu0 %v2133
        %2157 = vmatpush.msra.mxu0 %v2131
        %2158 = vmatpush.msra.mxu0 %v2129
        %2159 = vmatpush.msra.mxu0 %v2127
        %2160 = vmatpush.msra.mxu0 %v2125
        %2161 = vmatpush.msra.mxu0 %v2123
        %2162 = vmatpush.msra.mxu0 %v2121
        %2163 = vmatpush.msra.mxu0 %v2119
        %2164 = vmatpush.msra.mxu0 %v2117
        %2165 = vmatpush.msra.mxu0 %v2115
        %2166 = vmatpush.msra.mxu0 %v2113
        %2167 = vmatpush.msra.mxu0 %v2111
        %2168 = vmatpush.msra.mxu0 %v2109
        %2169 = vmatpush.msra.mxu0 %v2107
        %2170 = vmatmul.f32.gmra.mxu0 %v890
        %v2171 = vpop.f32.mrf.mxu0
        %v2172 = vadd.f32 0.0, %v2171
        %2173 = vmatmul.f32.gmra.mxu0 %v891
        %v2174 = vpop.f32.mrf.mxu0
        %v2175 = vadd.f32 0.0, %v2174
        %2176 = vmatmul.f32.gmra.mxu0 %v892
        %v2177 = vpop.f32.mrf.mxu0
        %v2178 = vadd.f32 0.0, %v2177
        %2179 = vmatmul.f32.gmra.mxu0 %v893
        %v2180 = vpop.f32.mrf.mxu0
        %v2181 = vadd.f32 0.0, %v2180
        %2182 = vmatmul.f32.gmra.mxu0 %v894
        %v2183 = vpop.f32.mrf.mxu0
        %v2184 = vadd.f32 0.0, %v2183
        %2185 = vmatmul.f32.gmra.mxu0 %v895
        %v2186 = vpop.f32.mrf.mxu0
        %v2187 = vadd.f32 0.0, %v2186
        %2188 = vmatmul.f32.gmra.mxu0 %v896
        %v2189 = vpop.f32.mrf.mxu0
        %v2190 = vadd.f32 0.0, %v2189
        %2191 = vmatmul.f32.gmra.mxu0 %v897
        %v2192 = vpop.f32.mrf.mxu0
        %v2193 = vadd.f32 0.0, %v2192
        %2194 = vmatmul.f32.gmra.mxu0 %v898
        %v2195 = vpop.f32.mrf.mxu0
        %v2196 = vadd.f32 0.0, %v2195
        %2197 = vmatmul.f32.gmra.mxu0 %v899
        %v2198 = vpop.f32.mrf.mxu0
        %v2199 = vadd.f32 0.0, %v2198
        %2200 = vmatmul.f32.gmra.mxu0 %v900
        %v2201 = vpop.f32.mrf.mxu0
        %v2202 = vadd.f32 0.0, %v2201
        %2203 = vmatmul.f32.gmra.mxu0 %v901
        %v2204 = vpop.f32.mrf.mxu0
        %v2205 = vadd.f32 0.0, %v2204
        %2206 = vmatmul.f32.gmra.mxu0 %v902
        %v2207 = vpop.f32.mrf.mxu0
        %v2208 = vadd.f32 0.0, %v2207
        %2209 = vmatmul.f32.gmra.mxu0 %v903
        %v2210 = vpop.f32.mrf.mxu0
        %v2211 = vadd.f32 0.0, %v2210
        %2212 = vmatmul.f32.gmra.mxu0 %v904
        %v2213 = vpop.f32.mrf.mxu0
        %v2214 = vadd.f32 0.0, %v2213
        %2215 = vmatmul.f32.gmra.mxu0 %v905
        %v2216 = vpop.f32.mrf.mxu0
        %v2217 = vadd.f32 0.0, %v2216
        %2218 = vdwg.mxu0
        %2219 = vrot.lane.b32.xlu0 %v2043, 96
        %v2220 = vpop.permute.xlu0 %2219
        %2221 = vrot.lane.b32.xlu0 %v2046, 96
        %v2222 = vpop.permute.xlu0 %2221
        %2223 = vrot.lane.b32.xlu0 %v2049, 96
        %v2224 = vpop.permute.xlu0 %2223
        %2225 = vrot.lane.b32.xlu0 %v2052, 96
        %v2226 = vpop.permute.xlu0 %2225
        %2227 = vrot.lane.b32.xlu0 %v2055, 96
        %v2228 = vpop.permute.xlu0 %2227
        %2229 = vrot.lane.b32.xlu0 %v2058, 96
        %v2230 = vpop.permute.xlu0 %2229
        %2231 = vrot.lane.b32.xlu0 %v2061, 96
        %v2232 = vpop.permute.xlu0 %2231
        %2233 = vrot.lane.b32.xlu0 %v2064, 96
        %v2234 = vpop.permute.xlu0 %2233
        %2235 = vrot.lane.b32.xlu0 %v2067, 96
        %v2236 = vpop.permute.xlu0 %2235
        %2237 = vrot.lane.b32.xlu0 %v2070, 96
        %v2238 = vpop.permute.xlu0 %2237
        %2239 = vrot.lane.b32.xlu0 %v2073, 96
        %v2240 = vpop.permute.xlu0 %2239
        %2241 = vrot.lane.b32.xlu0 %v2076, 96
        %v2242 = vpop.permute.xlu0 %2241
        %2243 = vrot.lane.b32.xlu0 %v2079, 96
        %v2244 = vpop.permute.xlu0 %2243
        %2245 = vrot.lane.b32.xlu0 %v2082, 96
        %v2246 = vpop.permute.xlu0 %2245
        %2247 = vrot.lane.b32.xlu0 %v2085, 96
        %v2248 = vpop.permute.xlu0 %2247
        %2249 = vrot.lane.b32.xlu0 %v2088, 96
        %v2250 = vpop.permute.xlu0 %2249
        %2267 = vmatpush.msra.mxu0 %v2250
        %2268 = vmatpush.msra.mxu0 %v2248
        %2269 = vmatpush.msra.mxu0 %v2246
        %2270 = vmatpush.msra.mxu0 %v2244
        %2271 = vmatpush.msra.mxu0 %v2242
        %2272 = vmatpush.msra.mxu0 %v2240
        %2273 = vmatpush.msra.mxu0 %v2238
        %2274 = vmatpush.msra.mxu0 %v2236
        %2275 = vmatpush.msra.mxu0 %v2234
        %2276 = vmatpush.msra.mxu0 %v2232
        %2277 = vmatpush.msra.mxu0 %v2230
        %2278 = vmatpush.msra.mxu0 %v2228
        %2279 = vmatpush.msra.mxu0 %v2226
        %2280 = vmatpush.msra.mxu0 %v2224
        %2281 = vmatpush.msra.mxu0 %v2222
        %2282 = vmatpush.msra.mxu0 %v2220
        %2283 = vmatmul.f32.gmra.mxu0 %v907
        %v2284 = vpop.f32.mrf.mxu0
        %v2285 = vadd.f32 0.0, %v2284
        %2286 = vmatmul.f32.gmra.mxu0 %v908
        %v2287 = vpop.f32.mrf.mxu0
        %v2288 = vadd.f32 0.0, %v2287
        %2289 = vmatmul.f32.gmra.mxu0 %v909
        %v2290 = vpop.f32.mrf.mxu0
        %v2291 = vadd.f32 0.0, %v2290
        %2292 = vmatmul.f32.gmra.mxu0 %v910
        %v2293 = vpop.f32.mrf.mxu0
        %v2294 = vadd.f32 0.0, %v2293
        %2295 = vmatmul.f32.gmra.mxu0 %v911
        %v2296 = vpop.f32.mrf.mxu0
        %v2297 = vadd.f32 0.0, %v2296
        %2298 = vmatmul.f32.gmra.mxu0 %v912
        %v2299 = vpop.f32.mrf.mxu0
        %v2300 = vadd.f32 0.0, %v2299
        %2301 = vmatmul.f32.gmra.mxu0 %v913
        %v2302 = vpop.f32.mrf.mxu0
        %v2303 = vadd.f32 0.0, %v2302
        %2304 = vmatmul.f32.gmra.mxu0 %v914
        %v2305 = vpop.f32.mrf.mxu0
        %v2306 = vadd.f32 0.0, %v2305
        %2307 = vmatmul.f32.gmra.mxu0 %v915
        %v2308 = vpop.f32.mrf.mxu0
        %v2309 = vadd.f32 0.0, %v2308
        %2310 = vmatmul.f32.gmra.mxu0 %v916
        %v2311 = vpop.f32.mrf.mxu0
        %v2312 = vadd.f32 0.0, %v2311
        %2313 = vmatmul.f32.gmra.mxu0 %v917
        %v2314 = vpop.f32.mrf.mxu0
        %v2315 = vadd.f32 0.0, %v2314
        %2316 = vmatmul.f32.gmra.mxu0 %v918
        %v2317 = vpop.f32.mrf.mxu0
        %v2318 = vadd.f32 0.0, %v2317
        %2319 = vmatmul.f32.gmra.mxu0 %v919
        %v2320 = vpop.f32.mrf.mxu0
        %v2321 = vadd.f32 0.0, %v2320
        %2322 = vmatmul.f32.gmra.mxu0 %v920
        %v2323 = vpop.f32.mrf.mxu0
        %v2324 = vadd.f32 0.0, %v2323
        %2325 = vmatmul.f32.gmra.mxu0 %v921
        %v2326 = vpop.f32.mrf.mxu0
        %v2327 = vadd.f32 0.0, %v2326
        %2328 = vmatmul.f32.gmra.mxu0 %v922
        %v2329 = vpop.f32.mrf.mxu0
        %v2330 = vadd.f32 0.0, %v2329
        %2331 = vdwg.mxu0
        %v2332 = vperm.slane %v386, 3
        %v2333 = vadd.f32 %v2043, %v2332
        %v2334 = vadd.f32 %v2046, %v2332
        %v2335 = vadd.f32 %v2049, %v2332
        %v2336 = vadd.f32 %v2052, %v2332
        %v2337 = vadd.f32 %v2055, %v2332
        %v2338 = vadd.f32 %v2058, %v2332
        %v2339 = vadd.f32 %v2061, %v2332
        %v2340 = vadd.f32 %v2064, %v2332
        %v2341 = vadd.f32 %v2067, %v2332
        %v2342 = vadd.f32 %v2070, %v2332
        %v2343 = vadd.f32 %v2073, %v2332
        %v2344 = vadd.f32 %v2076, %v2332
        %v2345 = vadd.f32 %v2079, %v2332
        %v2346 = vadd.f32 %v2082, %v2332
        %v2347 = vadd.f32 %v2085, %v2332
        %v2348 = vadd.f32 %v2088, %v2332
        %v2349 = vmul.f32 %v990, %v2333
        %v2350 = vmul.f32 %v991, %v2334
        %v2351 = vmul.f32 %v992, %v2335
        %v2352 = vmul.f32 %v993, %v2336
        %v2353 = vmul.f32 %v994, %v2337
        %v2354 = vmul.f32 %v995, %v2338
        %v2355 = vmul.f32 %v996, %v2339
        %v2356 = vmul.f32 %v997, %v2340
        %v2357 = vmul.f32 %v998, %v2341
        %v2358 = vmul.f32 %v999, %v2342
        %v2359 = vmul.f32 %v1000, %v2343
        %v2360 = vmul.f32 %v1001, %v2344
        %v2361 = vmul.f32 %v1002, %v2345
        %v2362 = vmul.f32 %v1003, %v2346
        %v2363 = vmul.f32 %v1004, %v2347
        %v2364 = vmul.f32 %v1005, %v2348
        %v2365 = vadd.f32 %v2349, %v2172
        %v2366 = vadd.f32 %v2350, %v2175
        %v2367 = vadd.f32 %v2351, %v2178
        %v2368 = vadd.f32 %v2352, %v2181
        %v2369 = vadd.f32 %v2353, %v2184
        %v2370 = vadd.f32 %v2354, %v2187
        %v2371 = vadd.f32 %v2355, %v2190
        %v2372 = vadd.f32 %v2356, %v2193
        %v2373 = vadd.f32 %v2357, %v2196
        %v2374 = vadd.f32 %v2358, %v2199
        %v2375 = vadd.f32 %v2359, %v2202
        %v2376 = vadd.f32 %v2360, %v2205
        %v2377 = vadd.f32 %v2361, %v2208
        %v2378 = vadd.f32 %v2362, %v2211
        %v2379 = vadd.f32 %v2363, %v2214
        %v2380 = vadd.f32 %v2364, %v2217
        %v2381 = vadd.f32 %v2365, %v2285
        %v2382 = vadd.f32 %v2366, %v2288
        %v2383 = vadd.f32 %v2367, %v2291
        %v2384 = vadd.f32 %v2368, %v2294
        %v2385 = vadd.f32 %v2369, %v2297
        %v2386 = vadd.f32 %v2370, %v2300
        %v2387 = vadd.f32 %v2371, %v2303
        %v2388 = vadd.f32 %v2372, %v2306
        %v2389 = vadd.f32 %v2373, %v2309
        %v2390 = vadd.f32 %v2374, %v2312
        %v2391 = vadd.f32 %v2375, %v2315
        %v2392 = vadd.f32 %v2376, %v2318
        %v2393 = vadd.f32 %v2377, %v2321
        %v2394 = vadd.f32 %v2378, %v2324
        %v2395 = vadd.f32 %v2379, %v2327
        %v2396 = vadd.f32 %v2380, %v2330
        %2397 = vmatpush.msra.mxu0 %v2396
        %2398 = vmatpush.msra.mxu0 %v2395
        %2399 = vmatpush.msra.mxu0 %v2394
        %2400 = vmatpush.msra.mxu0 %v2393
        %2401 = vmatpush.msra.mxu0 %v2392
        %2402 = vmatpush.msra.mxu0 %v2391
        %2403 = vmatpush.msra.mxu0 %v2390
        %2404 = vmatpush.msra.mxu0 %v2389
        %2405 = vmatpush.msra.mxu0 %v2388
        %2406 = vmatpush.msra.mxu0 %v2387
        %2407 = vmatpush.msra.mxu0 %v2386
        %2408 = vmatpush.msra.mxu0 %v2385
        %2409 = vmatpush.msra.mxu0 %v2384
        %2410 = vmatpush.msra.mxu0 %v2383
        %2411 = vmatpush.msra.mxu0 %v2382
        %2412 = vmatpush.msra.mxu0 %v2381
        %2413 = vmatmul.f32.gmra.mxu0 %v923
        %v2414 = vpop.f32.mrf.mxu0
        %v2415 = vadd.f32 0.0, %v2414
        %2416 = vmatmul.f32.gmra.mxu0 %v924
        %v2417 = vpop.f32.mrf.mxu0
        %v2418 = vadd.f32 0.0, %v2417
        %2419 = vdwg.mxu0
        %v2420 = vsel %vm635, %v2415, 0.0
        %2421 = vadd.xlane.f32.xlu0 %v2420
        %v2422 = vpop.xlane.xlu0 %2421
        %v2423 = vsel %vm635, %v2418, 0.0
        %2424 = vadd.xlane.f32.xlu0 %v2423
        %v2425 = vpop.xlane.xlu0 %2424
        %v2426 = vmul.f32 %v2422, 0.0078125
        %v2427 = vmul.f32 %v2425, 0.0078125
        %2428 = vmatpush.msra.mxu0 0.0
        %2429 = vmatpush.msra.mxu0 0.0
        %2430 = vmatpush.msra.mxu0 0.0
        %2431 = vmatpush.msra.mxu0 0.0
        %2432 = vmatpush.msra.mxu0 0.0
        %2433 = vmatpush.msra.mxu0 0.0
        %2434 = vmatpush.msra.mxu0 0.0
        %2435 = vmatpush.msra.mxu0 0.0
        %2436 = vmatpush.msra.mxu0 0.0
        %2437 = vmatpush.msra.mxu0 0.0
        %2438 = vmatpush.msra.mxu0 0.0
        %2439 = vmatpush.msra.mxu0 0.0
        %2440 = vmatpush.msra.mxu0 0.0
        %2441 = vmatpush.msra.mxu0 0.0
        %2442 = vmatpush.msra.mxu0 %v2427
        %2443 = vmatpush.msra.mxu0 %v2426
        %2444 = vmatmul.f32.gmra.mxu0 %v1459
        %v2445 = vpop.f32.mrf.mxu0
        %v2446 = vadd.f32 0.0, %v2445
        %2447 = vmatmul.f32.gmra.mxu0 %v1462
        %v2448 = vpop.f32.mrf.mxu0
        %v2449 = vadd.f32 0.0, %v2448
        %2450 = vmatmul.f32.gmra.mxu0 %v1465
        %v2451 = vpop.f32.mrf.mxu0
        %v2452 = vadd.f32 0.0, %v2451
        %2453 = vmatmul.f32.gmra.mxu0 %v1468
        %v2454 = vpop.f32.mrf.mxu0
        %v2455 = vadd.f32 0.0, %v2454
        %2456 = vmatmul.f32.gmra.mxu0 %v1471
        %v2457 = vpop.f32.mrf.mxu0
        %v2458 = vadd.f32 0.0, %v2457
        %2459 = vmatmul.f32.gmra.mxu0 %v1474
        %v2460 = vpop.f32.mrf.mxu0
        %v2461 = vadd.f32 0.0, %v2460
        %2462 = vmatmul.f32.gmra.mxu0 %v1477
        %v2463 = vpop.f32.mrf.mxu0
        %v2464 = vadd.f32 0.0, %v2463
        %2465 = vmatmul.f32.gmra.mxu0 %v1480
        %v2466 = vpop.f32.mrf.mxu0
        %v2467 = vadd.f32 0.0, %v2466
        %2468 = vmatmul.f32.gmra.mxu0 %v1483
        %v2469 = vpop.f32.mrf.mxu0
        %v2470 = vadd.f32 0.0, %v2469
        %2471 = vmatmul.f32.gmra.mxu0 %v1486
        %v2472 = vpop.f32.mrf.mxu0
        %v2473 = vadd.f32 0.0, %v2472
        %2474 = vmatmul.f32.gmra.mxu0 %v1489
        %v2475 = vpop.f32.mrf.mxu0
        %v2476 = vadd.f32 0.0, %v2475
        %2477 = vmatmul.f32.gmra.mxu0 %v1492
        %v2478 = vpop.f32.mrf.mxu0
        %v2479 = vadd.f32 0.0, %v2478
        %2480 = vmatmul.f32.gmra.mxu0 %v1495
        %v2481 = vpop.f32.mrf.mxu0
        %v2482 = vadd.f32 0.0, %v2481
        %2483 = vmatmul.f32.gmra.mxu0 %v1498
        %v2484 = vpop.f32.mrf.mxu0
        %v2485 = vadd.f32 0.0, %v2484
        %2486 = vmatmul.f32.gmra.mxu0 %v1501
        %v2487 = vpop.f32.mrf.mxu0
        %v2488 = vadd.f32 0.0, %v2487
        %2489 = vmatmul.f32.gmra.mxu0 %v1504
        %v2490 = vpop.f32.mrf.mxu0
        %v2491 = vadd.f32 0.0, %v2490
        %2492 = vdwg.mxu0
        %2494 = vset.pattern.permute.xlu0 0
        %2495 = vperm.xlu0 %2494, %v2446
        %v2496 = vpop.permute.xlu0 %2495
        %2499 = vset.pattern.permute.xlu0 0
        %2500 = vperm.xlu0 %2499, %v2449
        %v2501 = vpop.permute.xlu0 %2500
        %2504 = vset.pattern.permute.xlu0 0
        %2505 = vperm.xlu0 %2504, %v2452
        %v2506 = vpop.permute.xlu0 %2505
        %2509 = vset.pattern.permute.xlu0 0
        %2510 = vperm.xlu0 %2509, %v2455
        %v2511 = vpop.permute.xlu0 %2510
        %2514 = vset.pattern.permute.xlu0 0
        %2515 = vperm.xlu0 %2514, %v2458
        %v2516 = vpop.permute.xlu0 %2515
        %2519 = vset.pattern.permute.xlu0 0
        %2520 = vperm.xlu0 %2519, %v2461
        %v2521 = vpop.permute.xlu0 %2520
        %2524 = vset.pattern.permute.xlu0 0
        %2525 = vperm.xlu0 %2524, %v2464
        %v2526 = vpop.permute.xlu0 %2525
        %2529 = vset.pattern.permute.xlu0 0
        %2530 = vperm.xlu0 %2529, %v2467
        %v2531 = vpop.permute.xlu0 %2530
        %2534 = vset.pattern.permute.xlu0 0
        %2535 = vperm.xlu0 %2534, %v2470
        %v2536 = vpop.permute.xlu0 %2535
        %2539 = vset.pattern.permute.xlu0 0
        %2540 = vperm.xlu0 %2539, %v2473
        %v2541 = vpop.permute.xlu0 %2540
        %2544 = vset.pattern.permute.xlu0 0
        %2545 = vperm.xlu0 %2544, %v2476
        %v2546 = vpop.permute.xlu0 %2545
        %2549 = vset.pattern.permute.xlu0 0
        %2550 = vperm.xlu0 %2549, %v2479
        %v2551 = vpop.permute.xlu0 %2550
        %2554 = vset.pattern.permute.xlu0 0
        %2555 = vperm.xlu0 %2554, %v2482
        %v2556 = vpop.permute.xlu0 %2555
        %2559 = vset.pattern.permute.xlu0 0
        %2560 = vperm.xlu0 %2559, %v2485
        %v2561 = vpop.permute.xlu0 %2560
        %2564 = vset.pattern.permute.xlu0 0
        %2565 = vperm.xlu0 %2564, %v2488
        %v2566 = vpop.permute.xlu0 %2565
        %2569 = vset.pattern.permute.xlu0 0
        %2570 = vperm.xlu0 %2569, %v2491
        %v2571 = vpop.permute.xlu0 %2570
        %v2573 = vsub.f32 %v2381, %v2496
        %v2574 = vsub.f32 %v2382, %v2501
        %v2575 = vsub.f32 %v2383, %v2506
        %v2576 = vsub.f32 %v2384, %v2511
        %v2577 = vsub.f32 %v2385, %v2516
        %v2578 = vsub.f32 %v2386, %v2521
        %v2579 = vsub.f32 %v2387, %v2526
        %v2580 = vsub.f32 %v2388, %v2531
        %v2581 = vsub.f32 %v2389, %v2536
        %v2582 = vsub.f32 %v2390, %v2541
        %v2583 = vsub.f32 %v2391, %v2546
        %v2584 = vsub.f32 %v2392, %v2551
        %v2585 = vsub.f32 %v2393, %v2556
        %v2586 = vsub.f32 %v2394, %v2561
        %v2587 = vsub.f32 %v2395, %v2566
        %v2588 = vsub.f32 %v2396, %v2571
        %v2589 = vmul.f32 %v2573, %v2573
        %v2590 = vmul.f32 %v2574, %v2574
        %v2591 = vmul.f32 %v2575, %v2575
        %v2592 = vmul.f32 %v2576, %v2576
        %v2593 = vmul.f32 %v2577, %v2577
        %v2594 = vmul.f32 %v2578, %v2578
        %v2595 = vmul.f32 %v2579, %v2579
        %v2596 = vmul.f32 %v2580, %v2580
        %v2597 = vmul.f32 %v2581, %v2581
        %v2598 = vmul.f32 %v2582, %v2582
        %v2599 = vmul.f32 %v2583, %v2583
        %v2600 = vmul.f32 %v2584, %v2584
        %v2601 = vmul.f32 %v2585, %v2585
        %v2602 = vmul.f32 %v2586, %v2586
        %v2603 = vmul.f32 %v2587, %v2587
        %v2604 = vmul.f32 %v2588, %v2588
        %2605 = vmatpush.msra.mxu0 %v2604
        %2606 = vmatpush.msra.mxu0 %v2603
        %2607 = vmatpush.msra.mxu0 %v2602
        %2608 = vmatpush.msra.mxu0 %v2601
        %2609 = vmatpush.msra.mxu0 %v2600
        %2610 = vmatpush.msra.mxu0 %v2599
        %2611 = vmatpush.msra.mxu0 %v2598
        %2612 = vmatpush.msra.mxu0 %v2597
        %2613 = vmatpush.msra.mxu0 %v2596
        %2614 = vmatpush.msra.mxu0 %v2595
        %2615 = vmatpush.msra.mxu0 %v2594
        %2616 = vmatpush.msra.mxu0 %v2593
        %2617 = vmatpush.msra.mxu0 %v2592
        %2618 = vmatpush.msra.mxu0 %v2591
        %2619 = vmatpush.msra.mxu0 %v2590
        %2620 = vmatpush.msra.mxu0 %v2589
        %2621 = vmatmul.f32.gmra.mxu0 %v923
        %v2622 = vpop.f32.mrf.mxu0
        %v2623 = vadd.f32 0.0, %v2622
        %2624 = vmatmul.f32.gmra.mxu0 %v924
        %v2625 = vpop.f32.mrf.mxu0
        %v2626 = vadd.f32 0.0, %v2625
        %2627 = vdwg.mxu0
        %v2628 = vsel %vm635, %v2623, 0.0
        %2629 = vadd.xlane.f32.xlu0 %v2628
        %v2630 = vpop.xlane.xlu0 %2629
        %v2631 = vsel %vm635, %v2626, 0.0
        %2632 = vadd.xlane.f32.xlu0 %v2631
        %v2633 = vpop.xlane.xlu0 %2632
        %v2634 = vmul.f32 %v2630, 0.007874016
        %v2635 = vmul.f32 %v2633, 0.007874016
        %v2636 = vrsqrt.pop %v2634
        %v2637 = vmul.f32 %v2636, %v2634
        %v2638 = vmul.f32 %v2637, %v2636
        %v2639 = vmul.f32 0.5, %v2638
        %v2640 = vsub.f32 1.5, %v2639
        %v2641 = vmul.f32 %v2636, %v2640
        %v2642 = vmul.f32 %v2634, %v2641
        %vm2643 = vcmp.eq.f32.partialorder %v2634, inf
        %v2644 = vsel %vm2643, %v2634, %v2642
        %vm2645 = vcmp.eq.f32.partialorder %v2634, 0.0
        %v2646 = vand.u32 %v2634, 2147483648
        %v2647 = vsel %vm2645, %v2646, %v2644
        %v2648 = vrsqrt.pop %v2635
        %v2649 = vmul.f32 %v2648, %v2635
        %v2650 = vmul.f32 %v2649, %v2648
        %v2651 = vmul.f32 0.5, %v2650
        %v2652 = vsub.f32 1.5, %v2651
        %v2653 = vmul.f32 %v2648, %v2652
        %v2654 = vmul.f32 %v2635, %v2653
        %vm2655 = vcmp.eq.f32.partialorder %v2635, inf
        %v2656 = vsel %vm2655, %v2635, %v2654
        %vm2657 = vcmp.eq.f32.partialorder %v2635, 0.0
        %v2658 = vand.u32 %v2635, 2147483648
        %v2659 = vsel %vm2657, %v2658, %v2656
        %v2660 = vadd.f32 %v2647, 1e-05
        %v2661 = vadd.f32 %v2659, 1e-05
        %v2662 = vrcp.pop %v2660
        %v2663 = vmul.f32 %v2660, %v2662
        %v2664 = vsub.f32 1.0, %v2663
        %v2665 = vmul.f32 %v2662, %v2664
        %v2666 = vadd.f32 %v2662, %v2665
        %vm2667 = vweird.f32 %v2660
        %vm2668 = vweird.f32 %v2662
        %vm2669 = vmor %vm2667, %vm2668
        %v2670 = vsel %vm2669, %v2662, %v2666
        %v2671 = vand.u32 2147483647, %v2660
        %vm2672 = vcmp.eq.f32.partialorder %v2671, 8.507059e+37
        %v2673 = vand.u32 %v2660, 2147483648
        %v2674 = vor.u32 1.1754944e-38, %v2673
        %v2675 = vsel %vm2672, %v2674, %v2670
        %v2676 = vrcp.pop %v2661
        %v2677 = vmul.f32 %v2661, %v2676
        %v2678 = vsub.f32 1.0, %v2677
        %v2679 = vmul.f32 %v2676, %v2678
        %v2680 = vadd.f32 %v2676, %v2679
        %vm2681 = vweird.f32 %v2661
        %vm2682 = vweird.f32 %v2676
        %vm2683 = vmor %vm2681, %vm2682
        %v2684 = vsel %vm2683, %v2676, %v2680
        %v2685 = vand.u32 2147483647, %v2661
        %vm2686 = vcmp.eq.f32.partialorder %v2685, 8.507059e+37
        %v2687 = vand.u32 %v2661, 2147483648
        %v2688 = vor.u32 1.1754944e-38, %v2687
        %v2689 = vsel %vm2686, %v2688, %v2684
        %2690 = vmatpush.msra.mxu0 0.0
        %2691 = vmatpush.msra.mxu0 0.0
        %2692 = vmatpush.msra.mxu0 0.0
        %2693 = vmatpush.msra.mxu0 0.0
        %2694 = vmatpush.msra.mxu0 0.0
        %2695 = vmatpush.msra.mxu0 0.0
        %2696 = vmatpush.msra.mxu0 0.0
        %2697 = vmatpush.msra.mxu0 0.0
        %2698 = vmatpush.msra.mxu0 0.0
        %2699 = vmatpush.msra.mxu0 0.0
        %2700 = vmatpush.msra.mxu0 0.0
        %2701 = vmatpush.msra.mxu0 0.0
        %2702 = vmatpush.msra.mxu0 0.0
        %2703 = vmatpush.msra.mxu0 0.0
        %2704 = vmatpush.msra.mxu0 %v2689
        %2705 = vmatpush.msra.mxu0 %v2675
        %2706 = vmatmul.f32.gmra.mxu0 %v1459
        %v2707 = vpop.f32.mrf.mxu0
        %v2708 = vadd.f32 0.0, %v2707
        %2709 = vmatmul.f32.gmra.mxu0 %v1462
        %v2710 = vpop.f32.mrf.mxu0
        %v2711 = vadd.f32 0.0, %v2710
        %2712 = vmatmul.f32.gmra.mxu0 %v1465
        %v2713 = vpop.f32.mrf.mxu0
        %v2714 = vadd.f32 0.0, %v2713
        %2715 = vmatmul.f32.gmra.mxu0 %v1468
        %v2716 = vpop.f32.mrf.mxu0
        %v2717 = vadd.f32 0.0, %v2716
        %2718 = vmatmul.f32.gmra.mxu0 %v1471
        %v2719 = vpop.f32.mrf.mxu0
        %v2720 = vadd.f32 0.0, %v2719
        %2721 = vmatmul.f32.gmra.mxu0 %v1474
        %v2722 = vpop.f32.mrf.mxu0
        %v2723 = vadd.f32 0.0, %v2722
        %2724 = vmatmul.f32.gmra.mxu0 %v1477
        %v2725 = vpop.f32.mrf.mxu0
        %v2726 = vadd.f32 0.0, %v2725
        %2727 = vmatmul.f32.gmra.mxu0 %v1480
        %v2728 = vpop.f32.mrf.mxu0
        %v2729 = vadd.f32 0.0, %v2728
        %2730 = vmatmul.f32.gmra.mxu0 %v1483
        %v2731 = vpop.f32.mrf.mxu0
        %v2732 = vadd.f32 0.0, %v2731
        %2733 = vmatmul.f32.gmra.mxu0 %v1486
        %v2734 = vpop.f32.mrf.mxu0
        %v2735 = vadd.f32 0.0, %v2734
        %2736 = vmatmul.f32.gmra.mxu0 %v1489
        %v2737 = vpop.f32.mrf.mxu0
        %v2738 = vadd.f32 0.0, %v2737
        %2739 = vmatmul.f32.gmra.mxu0 %v1492
        %v2740 = vpop.f32.mrf.mxu0
        %v2741 = vadd.f32 0.0, %v2740
        %2742 = vmatmul.f32.gmra.mxu0 %v1495
        %v2743 = vpop.f32.mrf.mxu0
        %v2744 = vadd.f32 0.0, %v2743
        %2745 = vmatmul.f32.gmra.mxu0 %v1498
        %v2746 = vpop.f32.mrf.mxu0
        %v2747 = vadd.f32 0.0, %v2746
        %2748 = vmatmul.f32.gmra.mxu0 %v1501
        %v2749 = vpop.f32.mrf.mxu0
        %v2750 = vadd.f32 0.0, %v2749
        %2751 = vmatmul.f32.gmra.mxu0 %v1504
        %v2752 = vpop.f32.mrf.mxu0
        %v2753 = vadd.f32 0.0, %v2752
        %2754 = vdwg.mxu0
        %2756 = vset.pattern.permute.xlu0 0
        %2757 = vperm.xlu0 %2756, %v2708
        %v2758 = vpop.permute.xlu0 %2757
        %2761 = vset.pattern.permute.xlu0 0
        %2762 = vperm.xlu0 %2761, %v2711
        %v2763 = vpop.permute.xlu0 %2762
        %2766 = vset.pattern.permute.xlu0 0
        %2767 = vperm.xlu0 %2766, %v2714
        %v2768 = vpop.permute.xlu0 %2767
        %2771 = vset.pattern.permute.xlu0 0
        %2772 = vperm.xlu0 %2771, %v2717
        %v2773 = vpop.permute.xlu0 %2772
        %2776 = vset.pattern.permute.xlu0 0
        %2777 = vperm.xlu0 %2776, %v2720
        %v2778 = vpop.permute.xlu0 %2777
        %2781 = vset.pattern.permute.xlu0 0
        %2782 = vperm.xlu0 %2781, %v2723
        %v2783 = vpop.permute.xlu0 %2782
        %2786 = vset.pattern.permute.xlu0 0
        %2787 = vperm.xlu0 %2786, %v2726
        %v2788 = vpop.permute.xlu0 %2787
        %2791 = vset.pattern.permute.xlu0 0
        %2792 = vperm.xlu0 %2791, %v2729
        %v2793 = vpop.permute.xlu0 %2792
        %2796 = vset.pattern.permute.xlu0 0
        %2797 = vperm.xlu0 %2796, %v2732
        %v2798 = vpop.permute.xlu0 %2797
        %2801 = vset.pattern.permute.xlu0 0
        %2802 = vperm.xlu0 %2801, %v2735
        %v2803 = vpop.permute.xlu0 %2802
        %2806 = vset.pattern.permute.xlu0 0
        %2807 = vperm.xlu0 %2806, %v2738
        %v2808 = vpop.permute.xlu0 %2807
        %2811 = vset.pattern.permute.xlu0 0
        %2812 = vperm.xlu0 %2811, %v2741
        %v2813 = vpop.permute.xlu0 %2812
        %2816 = vset.pattern.permute.xlu0 0
        %2817 = vperm.xlu0 %2816, %v2744
        %v2818 = vpop.permute.xlu0 %2817
        %2821 = vset.pattern.permute.xlu0 0
        %2822 = vperm.xlu0 %2821, %v2747
        %v2823 = vpop.permute.xlu0 %2822
        %2826 = vset.pattern.permute.xlu0 0
        %2827 = vperm.xlu0 %2826, %v2750
        %v2828 = vpop.permute.xlu0 %2827
        %2831 = vset.pattern.permute.xlu0 0
        %2832 = vperm.xlu0 %2831, %v2753
        %v2833 = vpop.permute.xlu0 %2832
        %v2835 = vmul.f32 %v2573, %v2758
        %v2836 = vmul.f32 %v2574, %v2763
        %v2837 = vmul.f32 %v2575, %v2768
        %v2838 = vmul.f32 %v2576, %v2773
        %v2839 = vmul.f32 %v2577, %v2778
        %v2840 = vmul.f32 %v2578, %v2783
        %v2841 = vmul.f32 %v2579, %v2788
        %v2842 = vmul.f32 %v2580, %v2793
        %v2843 = vmul.f32 %v2581, %v2798
        %v2844 = vmul.f32 %v2582, %v2803
        %v2845 = vmul.f32 %v2583, %v2808
        %v2846 = vmul.f32 %v2584, %v2813
        %v2847 = vmul.f32 %v2585, %v2818
        %v2848 = vmul.f32 %v2586, %v2823
        %v2849 = vmul.f32 %v2587, %v2828
        %v2850 = vmul.f32 %v2588, %v2833
        %v2851 = vmax.f32 %v2835, %v2837
        %v2852 = vmax.f32 %v2836, %v2838
        %v2853 = vmax.f32 %v2851, %v2839
        %v2854 = vmax.f32 %v2852, %v2840
        %v2855 = vmax.f32 %v2853, %v2841
        %v2856 = vmax.f32 %v2854, %v2842
        %v2857 = vmax.f32 %v2855, %v2843
        %v2858 = vmax.f32 %v2856, %v2844
        %v2859 = vmax.f32 %v2857, %v2845
        %v2860 = vmax.f32 %v2858, %v2846
        %v2861 = vmax.f32 %v2859, %v2847
        %v2862 = vmax.f32 %v2860, %v2848
        %v2863 = vmax.f32 %v2861, %v2849
        %v2864 = vmax.f32 %v2862, %v2850
        %v2865 = vperm.slane %v386, 4
        %v2867 = vsel %vm635, %v2863, 0
        %v2870 = vsel %vm635, %v2864, 0
        %2872 = vmatpush.msra.mxu0 0.0
        %2873 = vmatpush.msra.mxu0 0.0
        %2874 = vmatpush.msra.mxu0 0.0
        %2875 = vmatpush.msra.mxu0 0.0
        %2876 = vmatpush.msra.mxu0 0.0
        %2877 = vmatpush.msra.mxu0 0.0
        %2878 = vmatpush.msra.mxu0 0.0
        %2879 = vmatpush.msra.mxu0 0.0
        %2880 = vmatpush.msra.mxu0 0.0
        %2881 = vmatpush.msra.mxu0 0.0
        %2882 = vmatpush.msra.mxu0 0.0
        %2883 = vmatpush.msra.mxu0 0.0
        %2884 = vmatpush.msra.mxu0 0.0
        %2885 = vmatpush.msra.mxu0 0.0
        %2886 = vmatpush.msra.mxu0 %v385
        %2887 = vmatpush.msra.mxu0 %v384
        %2888 = vmatmul.f32.gmra.mxu0 %v2867
        %v2889 = vpop.f32.mrf.mxu0
        %v2890 = vadd.f32 %v2865, %v2889
        %2891 = vmatmul.f32.gmra.mxu0 %v2870
        %v2892 = vpop.f32.mrf.mxu0
        %v2893 = vadd.f32 %v2865, %v2892
        %2894 = vdwg.mxu0
        %vm2895 = vcmp.gt.f32.partialorder %v2890, 0.0
        %vm2896 = vcmp.gt.f32.partialorder %v2893, 0.0
        %v2897 = vmul.f32 %v2890, 0.01
        %v2898 = vmul.f32 %v2893, 0.01
        %v2899 = vsel %vm2895, %v2890, %v2897
        %v2900 = vsel %vm2896, %v2893, %v2898
        %v2901 = vperm.slane %v386, 6
        %v2902 = vmul.f32 %v2899, %v2901
        %v2903 = vmul.f32 %v2900, %v2901
        %v2904 = vsel %vm408, %v2902, 0.0
        %2905 = vadd.xlane.f32.xlu0 %v2904
        %v2906 = vpop.xlane.xlu0 %2905
        %v2907 = vsel %vm408, %v2903, 0.0
        %2908 = vadd.xlane.f32.xlu0 %v2907
        %v2909 = vpop.xlane.xlu0 %2908
        %v2910 = vperm.slane %v387, 0
        %v2911 = vadd.f32 %v2906, %v2910
        %v2912 = vadd.f32 %v2909, %v2910
        %v2913 = vadd.f32 %v872, %v2911
        %v2914 = vadd.f32 %v873, %v2912
        %2916 = vset.pattern.permute.xlu0 0
        %2917 = vperm.xlu0 %2916, %v2913
        %v2918 = vpop.permute.xlu0 %2917
        %2921 = vset.pattern.permute.xlu0 0
        %2922 = vperm.xlu0 %2921, %v2914
        %v2923 = vpop.permute.xlu0 %2922
        %2925 = vst [vmem:[%s357] sm:$0xff] %v2918
        %2926 = vst [vmem:[%s357 + $0x8] sm:$0xff] %v2923
        %s2927 = sand.u32 %s235, 1
        %s2928 = scalar_lea.sflag [#allocation3], %s2927
        %s2929 = sand.u32 %s235, 1
        %s2930 = smul.addr %s2929, 16
        %s2931 = scalar_lea.vmem [#allocation2], %s2930
        // Predicated region
        $region57: #{tpu_custom_call.1} parent=55 // pred_check
          %p2932 = pneg %p245
        $region58: #{tpu_custom_call.1} parent=55 // pred_check_branch
          %2934 = sbr.rel (%p2932) target = $region60
        $region59: #{tpu_custom_call.1} parent=55 // pred_region
          %s2935 = smul.u32 2, %s23
          %2937 = vsyncadd %s2928, 0
          %s2938 = smul.addr %s2935, 8
          %s2939 = scalar_lea.hbm %s9, %s2938
          %s2940 = sshll.u32 %s2931, 4
          %s2941 = int_to_ptr.vmem [resolvable:$true] %s2940
          %s2942 = sshll.u32 %s2939, 4
          %s2943 = int_to_ptr.hbm [resolvable:$true] %s2942
          %2948 = dma.vmem_to_hbm [thread:$0]  %s2941, 256, %s2943, %s2928, 128, 128, 8
        $region60: #{tpu_custom_call.1} parent=55 // pred_fallthru
          _
      $region56: #{tpu_custom_call.1} parent=5 // pred_fallthru
        _
      %p2949 = scmp.le.s32.totalorder 2, %s18
      // Predicated region
      $region61: #{tpu_custom_call.1} parent=5 // pred_check
        %p2950 = pneg %p2949
      $region62: #{tpu_custom_call.1} parent=5 // pred_check_branch
        %2952 = sbr.rel (%p2950) target = $region64
      $region63: #{tpu_custom_call.1} parent=5 // pred_region
        %s2953 = ssub.s32 %s18, 2
        // Predicated region
        $region65: #{tpu_custom_call.1} parent=63 // pred_check
          %p2954 = pneg %p251
        $region66: #{tpu_custom_call.1} parent=63 // pred_check_branch
          %2956 = sbr.rel (%p2954) target = $region68
        $region67: #{tpu_custom_call.1} parent=63 // pred_region
          %s2957 = sand.u32 %s236, 1
          %s2958 = scalar_lea.sflag [#allocation3], %s2957
          %s2959 = sand.u32 %s236, 1
          %s2960 = smul.addr %s2959, 16
          %s2961 = scalar_lea.vmem [#allocation2], %s2960
          %2963 = dma.done %s2958, 256
        $region68: #{tpu_custom_call.1} parent=63 // pred_fallthru
          _
      $region64: #{tpu_custom_call.1} parent=5 // pred_fallthru
        _
    $region6: #{tpu_custom_call.1} parent=1 // loop_footer
      %s22 = sadd.s32 1, %s18
    $region7: #{tpu_custom_call.1} parent=1 // loop_footer_branch
      %17 = sbr.rel target = $region3
    $region8: #{tpu_custom_call.1} parent=1 // loop_exit
      _
    %2964 = vsyncpa [#allocation3], 1
    %s2965 = scalar_lea.sflag [#allocation3], 1
    %2966 = vsyncpa %s2965, 1

</llo_original>
